<compile_context>
chip_gen: v7x
topology: tpu7x:2x2x1
jax: 0.10.0
libtpu: 0.0.40
codegen_flags: <defaults>
</compile_context>

<pallas_src>
import jax
import jax.numpy as jnp
import numpy as np
from jax import lax
from jax.experimental import pallas as pl
from jax.experimental.pallas import tpu as pltpu


STATIC_UNROLL_MAX = 8   # fully unroll the recurrence for chunks up to this
FORI_UNROLL = 4         # bounded unroll for longer chunks


def lstm_fc_kernel(x_ref, wih_ref, whh_ref, b_ref, wfc_ref, bfc_ref,
                   out_ref, h_sc, c_sc, gates_sc):
    """One (batch_tile, time_chunk) grid step of the LSTM + final Linear."""
    chunk = pl.program_id(1)
    Bt, H = h_sc.shape
    tc = x_ref.shape[0]          # timesteps in this chunk (static)
    G = 4 * H

    @pl.when(chunk == 0)
    def _():
        h_sc[...] = jnp.zeros_like(h_sc)
        c_sc[...] = jnp.zeros_like(c_sc)

    # Hoisted input projection: one MXU matmul for the whole chunk, fused
    # bias broadcast once per chunk.  The x block is time-major (tc, Bt, D)
    # with Bt a multiple of 8, so this reshape is a clean sublane merge.
    x_flat = x_ref[...].reshape(tc * Bt, x_ref.shape[2])
    gates_x = (jnp.dot(x_flat, wih_ref[...],
                       preferred_element_type=jnp.float32)
               + b_ref[...])                               # (tc*Bt, 4H) f32

    h = h_sc[...]                                          # f32 state
    c = c_sc[...]

    def cell(gx, h, c):
        # W_hh stays in VMEM (re-read each step) -> no vreg-file blowup at
        # production H; the recurrent dot is the only MXU op on the
        # per-timestep critical path.
        gates = gx + jnp.dot(h.astype(whh_ref.dtype), whh_ref[...],
                             preferred_element_type=jnp.float32)
        # Wrapper permuted the gate order to (i, f, o, g): one sigmoid over
        # the first 3H lanes, one tanh over the last H lanes.
        sig = jax.nn.sigmoid(gates[:, :3 * H])
        i = sig[:, 0 * H:1 * H]
        f = sig[:, 1 * H:2 * H]
        o = sig[:, 2 * H:3 * H]
        g = jnp.tanh(gates[:, 3 * H:])
        c_new = f * c + i * g
        h_new = o * jnp.tanh(c_new)
        return h_new, c_new

    if tc <= STATIC_UNROLL_MAX:
        # Short chunk: static unroll, gates stay in registers, static
        # full-sublane row slices.
        for t in range(tc):
            h, c = cell(gates_x[t * Bt:(t + 1) * Bt, :], h, c)
    else:
        # Long chunk: park the hoisted gates in VMEM and run a bounded-unroll
        # fori_loop so register pressure / compile time stay constant in tc.
        gates_sc[...] = gates_x.reshape(tc, Bt, G)

        def body(t, carry):
            h, c = carry
            return cell(gates_sc[t], h, c)

        h, c = lax.fori_loop(0, tc, body, (h, c), unroll=FORI_UNROLL)

    # Persist state across the sequential time-chunk axis.
    h_sc[...] = h
    c_sc[...] = c

    # Final Linear on the last timestep's hidden state (lane-dense C_pad).
    @pl.when(chunk == pl.num_programs(1) - 1)
    def _():
        out_ref[...] = (jnp.dot(h.astype(wfc_ref.dtype), wfc_ref[...],
                                preferred_element_type=jnp.float32)
                        + bfc_ref[...]).astype(out_ref.dtype)


def _round_up(n, m):
    return (n + m - 1) // m * m


def _permute_gates_ifog(w):
    """PyTorch packs LSTM params as (i, f, g, o) along the leading 4H axis;
    reorder to (i, f, o, g) so the sigmoid gates are contiguous."""
    i, f, g, o = jnp.split(w, 4, axis=0)
    return jnp.concatenate([i, f, o, g], axis=0)


def _vmem_capacity_bytes():
    try:
        return int(pltpu.get_tpu_info().vmem_capacity_bytes)
    except Exception:
        return 64 * 1024 * 1024   # conservative (v7x per-TensorCore)


def simple_lstm_forward(x, w_ih, w_hh, b_ih, b_hh, w_fc, b_fc, *,
                        t_chunk=None, b_tile=None,
                        matmul_dtype=jnp.bfloat16):
    """Forward pass of SimpleLSTM.

    x: (B, T, D) float32 (batch_first, like PyTorch)
    w_ih: (4H, D), w_hh: (4H, H), b_ih/b_hh: (4H,)   (PyTorch gate order)
    w_fc: (C, H), b_fc: (C,)
    Returns (B, C) float32.
    """
    B, T, D = x.shape
    H = w_hh.shape[1]
    C = w_fc.shape[0]
    G = 4 * H

    # --- tiling choices ------------------------------------------------------
    B_pad = _round_up(B, 8)                 # full sublanes for the gate math
    if b_tile is None:
        # >=2 batch tiles when possible so v7x's two TensorCores both work.
        b_tile = B_pad // 2 if (B_pad >= 16 and (B_pad // 2) % 8 == 0) else B_pad
    if t_chunk is None:
        t_chunk = T
    if T % t_chunk != 0:
        raise ValueError("T must be divisible by t_chunk")
    if B_pad % b_tile != 0 or b_tile % 8 != 0:
        raise ValueError("b_tile must divide the padded batch and be a "
                         "multiple of 8")
    n_btiles = B_pad // b_tile
    n_chunks = T // t_chunk
    C_pad = _round_up(C, 128)               # lane-dense FC output

    # --- operand preparation (single fused XLA copy of x: pad + cast +
    #     time-major reorder; weight casts are tiny one-offs) -----------------
    x_p = jnp.zeros((B_pad, T, D), matmul_dtype).at[:B].set(
        x.astype(matmul_dtype))
    x_tm = jnp.transpose(x_p, (1, 0, 2))                     # (T, B_pad, D)

    wih_t = jnp.transpose(_permute_gates_ifog(w_ih)).astype(matmul_dtype)
    whh_t = jnp.transpose(_permute_gates_ifog(w_hh)).astype(matmul_dtype)
    b = _permute_gates_ifog(b_ih + b_hh).reshape(1, G).astype(jnp.float32)
    wfc_t = jnp.zeros((H, C_pad), matmul_dtype).at[:, :C].set(
        jnp.transpose(w_fc).astype(matmul_dtype))
    bfc = jnp.zeros((1, C_pad), jnp.float32).at[:, :C].set(
        b_fc.reshape(1, C).astype(jnp.float32))

    # --- constant-operand specs: single-buffered (their block never changes
    #     across the grid; double-buffering would only double VMEM use) -------
    def _const_spec(shape):
        try:
            return pl.BlockSpec(shape, lambda bt, c: (0, 0),
                                pipeline_mode=pl.Buffered(1))
        except (TypeError, AttributeError):   # older BlockSpec API
            return pl.BlockSpec(shape, lambda bt, c: (0, 0))

    # --- VMEM budget / cost model ---------------------------------------------
    isz = jnp.dtype(matmul_dtype).itemsize
    vmem_needed = (
        2 * t_chunk * b_tile * D * isz          # x chunk (double-buffered)
        + (D + H) * G * isz + G * 4             # W_ih^T, W_hh^T, fused bias
        + H * C_pad * isz + C_pad * 4           # W_fc^T, b_fc
        + 2 * t_chunk * b_tile * G * 4          # gates scratch + live gates_x
        + 2 * b_tile * H * 4                    # h / c state
        + 2 * b_tile * C_pad * 4)               # output block
    vmem_limit = int(max(32 * 1024 * 1024,
                         min(2 * vmem_needed + (8 << 20),
                             int(0.8 * _vmem_capacity_bytes()))))

    cost = pl.CostEstimate(
        flops=2 * T * B_pad * (D + H) * G + 2 * B_pad * H * C_pad,
        transcendentals=5 * T * B_pad * H,
        bytes_accessed=(B_pad * T * D * isz + (D + H) * G * isz + G * 4
                        + H * C_pad * isz + C_pad * 4 + B_pad * C_pad * 4))

    out_pad = pl.pallas_call(
        lstm_fc_kernel,
        out_shape=jax.ShapeDtypeStruct((B_pad, C_pad), jnp.float32),
        grid_spec=pltpu.PrefetchScalarGridSpec(
            num_scalar_prefetch=0,
            grid=(n_btiles, n_chunks),
            in_specs=[
                # x, time-major: (t_chunk, b_tile, D) per grid step.
                pl.BlockSpec((t_chunk, b_tile, D), lambda bt, c: (c, bt, 0)),
                _const_spec((D, G)),           # W_ih^T  (gate order i,f,o,g)
                _const_spec((H, G)),           # W_hh^T
                _const_spec((1, G)),           # fused bias b_ih + b_hh
                _const_spec((H, C_pad)),       # W_fc^T (lane-padded)
                _const_spec((1, C_pad)),       # b_fc   (lane-padded)
            ],
            out_specs=pl.BlockSpec((b_tile, C_pad), lambda bt, c: (bt, 0)),
            scratch_shapes=[
                pltpu.VMEM((b_tile, H), jnp.float32),          # h state
                pltpu.VMEM((b_tile, H), jnp.float32),          # c state
                pltpu.VMEM((t_chunk, b_tile, G), jnp.float32), # hoisted gates
            ],
        ),
        compiler_params=pltpu.CompilerParams(
            dimension_semantics=("parallel", "arbitrary"),
            vmem_limit_bytes=vmem_limit,
        ),
        cost_estimate=cost,
    )(x_tm, wih_t, whh_t, b, wfc_t, bfc)

    return out_pad[:B, :C]


def reference_forward(x, w_ih, w_hh, b_ih, b_hh, w_fc, b_fc):
    """Pure-JAX reference matching PyTorch nn.LSTM + Linear semantics."""
    B, T, D = x.shape
    H = w_hh.shape[1]

    def step(carry, x_t):
        h, c = carry
        gates = x_t @ w_ih.T + b_ih + h @ w_hh.T + b_hh
        i = jax.nn.sigmoid(gates[:, 0 * H:1 * H])
        f = jax.nn.sigmoid(gates[:, 1 * H:2 * H])
        g = jnp.tanh(gates[:, 2 * H:3 * H])
        o = jax.nn.sigmoid(gates[:, 3 * H:4 * H])
        c = f * c + i * g
        h = o * jnp.tanh(c)
        return (h, c), None

    h0 = jnp.zeros((B, H), jnp.float32)
    c0 = jnp.zeros((B, H), jnp.float32)
    (h_T, _), _ = lax.scan(step, (h0, c0), jnp.transpose(x, (1, 0, 2)))
    return h_T @ w_fc.T + b_fc


if __name__ == "__main__":
    def make_inputs(key, B, T, D, H, C):
        keys = jax.random.split(key, 7)
        k = 1.0 / np.sqrt(H)   # PyTorch default init range for LSTM / Linear
        x = jax.random.normal(keys[0], (B, T, D), dtype=jnp.float32)
        w_ih = jax.random.uniform(keys[1], (4 * H, D), jnp.float32, -k, k)
        w_hh = jax.random.uniform(keys[2], (4 * H, H), jnp.float32, -k, k)
        b_ih = jax.random.uniform(keys[3], (4 * H,), jnp.float32, -k, k)
        b_hh = jax.random.uniform(keys[4], (4 * H,), jnp.float32, -k, k)
        w_fc = jax.random.uniform(keys[5], (C, H), jnp.float32, -k, k)
        b_fc = jax.random.uniform(keys[6], (C,), jnp.float32, -k, k)
        return x, w_ih, w_hh, b_ih, b_hh, w_fc, b_fc

    key = jax.random.PRNGKey(0)
    k_a, k_b = jax.random.split(key)

    # --- config A: the module-spec shapes ------------------------------------
    # SimpleLSTM(input_size=16, hidden_size=32, nb_class=8), batch=2, seq=8.
    args_a = make_inputs(k_a, B=2, T=8, D=16, H=32, C=8)
    ref_a = reference_forward(*args_a)

    # 1) f32 matmuls, single time chunk, statically unrolled recurrence.
    out_f32 = jax.block_until_ready(
        simple_lstm_forward(*args_a, matmul_dtype=jnp.float32))
    np.testing.assert_allclose(np.asarray(out_f32), np.asarray(ref_a),
                               rtol=1e-5, atol=1e-5)

    # 2) bf16 matmul operands (the default; f32 accumulation / state).
    out_bf16 = jax.block_until_ready(simple_lstm_forward(*args_a))
    np.testing.assert_allclose(np.asarray(out_bf16), np.asarray(ref_a),
                               rtol=5e-2, atol=5e-2)

    # --- config B: exercises chunked time (h/c carried across the sequential
    #     grid axis), the fori_loop recurrence path, and 2 parallel batch
    #     tiles (both v7x TensorCores) -----------------------------------------
    args_b = make_inputs(k_b, B=16, T=32, D=16, H=32, C=8)
    ref_b = reference_forward(*args_b)
    out_b = jax.block_until_ready(
        simple_lstm_forward(*args_b, t_chunk=16, b_tile=8,
                            matmul_dtype=jnp.float32))
    np.testing.assert_allclose(np.asarray(out_b), np.asarray(ref_b),
                               rtol=1e-4, atol=1e-4)

    print("KERNEL_OK")
</pallas_src>

<mosaic_0001>
module attributes {stable_mosaic.version = 11 : i64} {
  func.func @lstm_fc_kernel(%arg0: i32, %arg1: i32, %arg2: memref<8x8x16xf32, #tpu.memory_space<vmem>>, %arg3: memref<16x128xf32, #tpu.memory_space<vmem>>, %arg4: memref<32x128xf32, #tpu.memory_space<vmem>>, %arg5: memref<1x128xf32, #tpu.memory_space<vmem>>, %arg6: memref<32x128xf32, #tpu.memory_space<vmem>>, %arg7: memref<1x128xf32, #tpu.memory_space<vmem>>, %arg8: memref<8x128xf32, #tpu.memory_space<vmem>>, %arg9: memref<8x32xf32, #tpu.memory_space<vmem>>, %arg10: memref<8x32xf32, #tpu.memory_space<vmem>>, %arg11: memref<8x8x128xf32, #tpu.memory_space<vmem>>) attributes {dimension_semantics = [#tpu.dimension_semantics<parallel>, #tpu.dimension_semantics<arbitrary>], iteration_bounds = array<i64: 1, 1>, scalar_prefetch = 0 : i64, scratch_operands = 3 : i64, tpu.core_type = #tpu.core_type<tc>, window_params = [{transform_indices = @transform_0, window_bounds = array<i64: 8, 8, 16>}, {pipeline_mode = #tpu.pipeline_mode<synchronous>, transform_indices = @transform_1, window_bounds = array<i64: 16, 128>}, {pipeline_mode = #tpu.pipeline_mode<synchronous>, transform_indices = @transform_2, window_bounds = array<i64: 32, 128>}, {pipeline_mode = #tpu.pipeline_mode<synchronous>, transform_indices = @transform_3, window_bounds = array<i64: 1, 128>}, {pipeline_mode = #tpu.pipeline_mode<synchronous>, transform_indices = @transform_4, window_bounds = array<i64: 32, 128>}, {pipeline_mode = #tpu.pipeline_mode<synchronous>, transform_indices = @transform_5, window_bounds = array<i64: 1, 128>}, {transform_indices = @transform_6, window_bounds = array<i64: 8, 128>}]} {
    %c0_i32 = arith.constant 0 : i32
    %0 = arith.cmpi eq, %arg1, %c0_i32 : i32
    %1 = arith.extui %0 : i1 to i32
    %c0_i32_0 = arith.constant 0 : i32
    %2 = arith.cmpi ne, %1, %c0_i32_0 : i32
    scf.if %2 {
      %cst_49 = arith.constant 0.000000e+00 : f32
      %177 = vector.broadcast %cst_49 : f32 to vector<8x32xf32>
      %c0_50 = arith.constant 0 : index
      %c0_51 = arith.constant 0 : index
      %178 = vector.load %arg9[%c0_50, %c0_51] : memref<8x32xf32, #tpu.memory_space<vmem>>, vector<8x32xf32>
      tpu.vector_store %arg9[%c0_50, %c0_51], %177 {strides = array<i32>} : memref<8x32xf32, #tpu.memory_space<vmem>>, vector<8x32xf32>,
      %cst_52 = arith.constant 0.000000e+00 : f32
      %179 = vector.broadcast %cst_52 : f32 to vector<8x32xf32>
      %c0_53 = arith.constant 0 : index
      %c0_54 = arith.constant 0 : index
      %180 = vector.load %arg10[%c0_53, %c0_54] : memref<8x32xf32, #tpu.memory_space<vmem>>, vector<8x32xf32>
      tpu.vector_store %arg10[%c0_53, %c0_54], %179 {strides = array<i32>} : memref<8x32xf32, #tpu.memory_space<vmem>>, vector<8x32xf32>,
    } else {
    }
    %c0 = arith.constant 0 : index
    %c0_1 = arith.constant 0 : index
    %c0_2 = arith.constant 0 : index
    %3 = vector.load %arg2[%c0, %c0_1, %c0_2] : memref<8x8x16xf32, #tpu.memory_space<vmem>>, vector<8x8x16xf32>
    %4 = vector.shape_cast %3 : vector<8x8x16xf32> to vector<64x16xf32>
    %c0_3 = arith.constant 0 : index
    %c0_4 = arith.constant 0 : index
    %5 = vector.load %arg3[%c0_3, %c0_4] : memref<16x128xf32, #tpu.memory_space<vmem>>, vector<16x128xf32>
    %cst = arith.constant dense<0.000000e+00> : vector<64x128xf32>
    %6 = tpu.matmul %4, %5, %cst {dimension_numbers = #tpu.dot_dimension_numbers<[1], [0], [0], [1], [0, 0, 1, 1], [], []>} : vector<64x16xf32>, vector<16x128xf32>, vector<64x128xf32> -> vector<64x128xf32>
    %c0_5 = arith.constant 0 : index
    %c0_6 = arith.constant 0 : index
    %7 = vector.load %arg5[%c0_5, %c0_6] : memref<1x128xf32, #tpu.memory_space<vmem>>, vector<1x128xf32>
    %8 = vector.broadcast %7 : vector<1x128xf32> to vector<64x128xf32>
    %9 = arith.addf %6, %8 : vector<64x128xf32>
    %c0_7 = arith.constant 0 : index
    %c0_8 = arith.constant 0 : index
    %10 = vector.load %arg9[%c0_7, %c0_8] : memref<8x32xf32, #tpu.memory_space<vmem>>, vector<8x32xf32>
    %c0_9 = arith.constant 0 : index
    %c0_10 = arith.constant 0 : index
    %11 = vector.load %arg10[%c0_9, %c0_10] : memref<8x32xf32, #tpu.memory_space<vmem>>, vector<8x32xf32>
    %12 = vector.extract_strided_slice %9 {offsets = [0, 0], sizes = [8, 128], strides = [1, 1]} : vector<64x128xf32> to vector<8x128xf32>
    %c0_11 = arith.constant 0 : index
    %c0_12 = arith.constant 0 : index
    %13 = vector.load %arg4[%c0_11, %c0_12] : memref<32x128xf32, #tpu.memory_space<vmem>>, vector<32x128xf32>
    %cst_13 = arith.constant dense<0.000000e+00> : vector<8x128xf32>
    %14 = tpu.matmul %10, %13, %cst_13 {dimension_numbers = #tpu.dot_dimension_numbers<[1], [0], [0], [1], [0, 0, 1, 1], [], []>} : vector<8x32xf32>, vector<32x128xf32>, vector<8x128xf32> -> vector<8x128xf32>
    %15 = arith.addf %12, %14 : vector<8x128xf32>
    %16 = vector.extract_strided_slice %15 {offsets = [0, 0], sizes = [8, 96], strides = [1, 1]} : vector<8x128xf32> to vector<8x96xf32>
    %17 = arith.negf %16 : vector<8x96xf32>
    %18 = math.exp %17 : vector<8x96xf32>
    %cst_14 = arith.constant 1.000000e+00 : f32
    %19 = vector.broadcast %cst_14 : f32 to vector<8x96xf32>
    %20 = arith.addf %19, %18 : vector<8x96xf32>
    %21 = arith.divf %19, %20 : vector<8x96xf32>
    %22 = vector.extract_strided_slice %21 {offsets = [0, 0], sizes = [8, 32], strides = [1, 1]} : vector<8x96xf32> to vector<8x32xf32>
    %23 = vector.extract_strided_slice %21 {offsets = [0, 32], sizes = [8, 32], strides = [1, 1]} : vector<8x96xf32> to vector<8x32xf32>
    %24 = vector.extract_strided_slice %21 {offsets = [0, 64], sizes = [8, 32], strides = [1, 1]} : vector<8x96xf32> to vector<8x32xf32>
    %25 = vector.extract_strided_slice %15 {offsets = [0, 96], sizes = [8, 32], strides = [1, 1]} : vector<8x128xf32> to vector<8x32xf32>
    %26 = math.tanh %25 : vector<8x32xf32>
    %27 = arith.mulf %23, %11 : vector<8x32xf32>
    %28 = arith.mulf %22, %26 : vector<8x32xf32>
    %29 = arith.addf %27, %28 : vector<8x32xf32>
    %30 = math.tanh %29 : vector<8x32xf32>
    %31 = arith.mulf %24, %30 : vector<8x32xf32>
    %32 = vector.extract_strided_slice %9 {offsets = [8, 0], sizes = [8, 128], strides = [1, 1]} : vector<64x128xf32> to vector<8x128xf32>
    %c0_15 = arith.constant 0 : index
    %c0_16 = arith.constant 0 : index
    %33 = vector.load %arg4[%c0_15, %c0_16] : memref<32x128xf32, #tpu.memory_space<vmem>>, vector<32x128xf32>
    %cst_17 = arith.constant dense<0.000000e+00> : vector<8x128xf32>
    %34 = tpu.matmul %31, %33, %cst_17 {dimension_numbers = #tpu.dot_dimension_numbers<[1], [0], [0], [1], [0, 0, 1, 1], [], []>} : vector<8x32xf32>, vector<32x128xf32>, vector<8x128xf32> -> vector<8x128xf32>
    %35 = arith.addf %32, %34 : vector<8x128xf32>
    %36 = vector.extract_strided_slice %35 {offsets = [0, 0], sizes = [8, 96], strides = [1, 1]} : vector<8x128xf32> to vector<8x96xf32>
    %37 = arith.negf %36 : vector<8x96xf32>
    %38 = math.exp %37 : vector<8x96xf32>
    %cst_18 = arith.constant 1.000000e+00 : f32
    %39 = vector.broadcast %cst_18 : f32 to vector<8x96xf32>
    %40 = arith.addf %39, %38 : vector<8x96xf32>
    %41 = arith.divf %39, %40 : vector<8x96xf32>
    %42 = vector.extract_strided_slice %41 {offsets = [0, 0], sizes = [8, 32], strides = [1, 1]} : vector<8x96xf32> to vector<8x32xf32>
    %43 = vector.extract_strided_slice %41 {offsets = [0, 32], sizes = [8, 32], strides = [1, 1]} : vector<8x96xf32> to vector<8x32xf32>
    %44 = vector.extract_strided_slice %41 {offsets = [0, 64], sizes = [8, 32], strides = [1, 1]} : vector<8x96xf32> to vector<8x32xf32>
    %45 = vector.extract_strided_slice %35 {offsets = [0, 96], sizes = [8, 32], strides = [1, 1]} : vector<8x128xf32> to vector<8x32xf32>
    %46 = math.tanh %45 : vector<8x32xf32>
    %47 = arith.mulf %43, %29 : vector<8x32xf32>
    %48 = arith.mulf %42, %46 : vector<8x32xf32>
    %49 = arith.addf %47, %48 : vector<8x32xf32>
    %50 = math.tanh %49 : vector<8x32xf32>
    %51 = arith.mulf %44, %50 : vector<8x32xf32>
    %52 = vector.extract_strided_slice %9 {offsets = [16, 0], sizes = [8, 128], strides = [1, 1]} : vector<64x128xf32> to vector<8x128xf32>
    %c0_19 = arith.constant 0 : index
    %c0_20 = arith.constant 0 : index
    %53 = vector.load %arg4[%c0_19, %c0_20] : memref<32x128xf32, #tpu.memory_space<vmem>>, vector<32x128xf32>
    %cst_21 = arith.constant dense<0.000000e+00> : vector<8x128xf32>
    %54 = tpu.matmul %51, %53, %cst_21 {dimension_numbers = #tpu.dot_dimension_numbers<[1], [0], [0], [1], [0, 0, 1, 1], [], []>} : vector<8x32xf32>, vector<32x128xf32>, vector<8x128xf32> -> vector<8x128xf32>
    %55 = arith.addf %52, %54 : vector<8x128xf32>
    %56 = vector.extract_strided_slice %55 {offsets = [0, 0], sizes = [8, 96], strides = [1, 1]} : vector<8x128xf32> to vector<8x96xf32>
    %57 = arith.negf %56 : vector<8x96xf32>
    %58 = math.exp %57 : vector<8x96xf32>
    %cst_22 = arith.constant 1.000000e+00 : f32
    %59 = vector.broadcast %cst_22 : f32 to vector<8x96xf32>
    %60 = arith.addf %59, %58 : vector<8x96xf32>
    %61 = arith.divf %59, %60 : vector<8x96xf32>
    %62 = vector.extract_strided_slice %61 {offsets = [0, 0], sizes = [8, 32], strides = [1, 1]} : vector<8x96xf32> to vector<8x32xf32>
    %63 = vector.extract_strided_slice %61 {offsets = [0, 32], sizes = [8, 32], strides = [1, 1]} : vector<8x96xf32> to vector<8x32xf32>
    %64 = vector.extract_strided_slice %61 {offsets = [0, 64], sizes = [8, 32], strides = [1, 1]} : vector<8x96xf32> to vector<8x32xf32>
    %65 = vector.extract_strided_slice %55 {offsets = [0, 96], sizes = [8, 32], strides = [1, 1]} : vector<8x128xf32> to vector<8x32xf32>
    %66 = math.tanh %65 : vector<8x32xf32>
    %67 = arith.mulf %63, %49 : vector<8x32xf32>
    %68 = arith.mulf %62, %66 : vector<8x32xf32>
    %69 = arith.addf %67, %68 : vector<8x32xf32>
    %70 = math.tanh %69 : vector<8x32xf32>
    %71 = arith.mulf %64, %70 : vector<8x32xf32>
    %72 = vector.extract_strided_slice %9 {offsets = [24, 0], sizes = [8, 128], strides = [1, 1]} : vector<64x128xf32> to vector<8x128xf32>
    %c0_23 = arith.constant 0 : index
    %c0_24 = arith.constant 0 : index
    %73 = vector.load %arg4[%c0_23, %c0_24] : memref<32x128xf32, #tpu.memory_space<vmem>>, vector<32x128xf32>
    %cst_25 = arith.constant dense<0.000000e+00> : vector<8x128xf32>
    %74 = tpu.matmul %71, %73, %cst_25 {dimension_numbers = #tpu.dot_dimension_numbers<[1], [0], [0], [1], [0, 0, 1, 1], [], []>} : vector<8x32xf32>, vector<32x128xf32>, vector<8x128xf32> -> vector<8x128xf32>
    %75 = arith.addf %72, %74 : vector<8x128xf32>
    %76 = vector.extract_strided_slice %75 {offsets = [0, 0], sizes = [8, 96], strides = [1, 1]} : vector<8x128xf32> to vector<8x96xf32>
    %77 = arith.negf %76 : vector<8x96xf32>
    %78 = math.exp %77 : vector<8x96xf32>
    %cst_26 = arith.constant 1.000000e+00 : f32
    %79 = vector.broadcast %cst_26 : f32 to vector<8x96xf32>
    %80 = arith.addf %79, %78 : vector<8x96xf32>
    %81 = arith.divf %79, %80 : vector<8x96xf32>
    %82 = vector.extract_strided_slice %81 {offsets = [0, 0], sizes = [8, 32], strides = [1, 1]} : vector<8x96xf32> to vector<8x32xf32>
    %83 = vector.extract_strided_slice %81 {offsets = [0, 32], sizes = [8, 32], strides = [1, 1]} : vector<8x96xf32> to vector<8x32xf32>
    %84 = vector.extract_strided_slice %81 {offsets = [0, 64], sizes = [8, 32], strides = [1, 1]} : vector<8x96xf32> to vector<8x32xf32>
    %85 = vector.extract_strided_slice %75 {offsets = [0, 96], sizes = [8, 32], strides = [1, 1]} : vector<8x128xf32> to vector<8x32xf32>
    %86 = math.tanh %85 : vector<8x32xf32>
    %87 = arith.mulf %83, %69 : vector<8x32xf32>
    %88 = arith.mulf %82, %86 : vector<8x32xf32>
    %89 = arith.addf %87, %88 : vector<8x32xf32>
    %90 = math.tanh %89 : vector<8x32xf32>
    %91 = arith.mulf %84, %90 : vector<8x32xf32>
    %92 = vector.extract_strided_slice %9 {offsets = [32, 0], sizes = [8, 128], strides = [1, 1]} : vector<64x128xf32> to vector<8x128xf32>
    %c0_27 = arith.constant 0 : index
    %c0_28 = arith.constant 0 : index
    %93 = vector.load %arg4[%c0_27, %c0_28] : memref<32x128xf32, #tpu.memory_space<vmem>>, vector<32x128xf32>
    %cst_29 = arith.constant dense<0.000000e+00> : vector<8x128xf32>
    %94 = tpu.matmul %91, %93, %cst_29 {dimension_numbers = #tpu.dot_dimension_numbers<[1], [0], [0], [1], [0, 0, 1, 1], [], []>} : vector<8x32xf32>, vector<32x128xf32>, vector<8x128xf32> -> vector<8x128xf32>
    %95 = arith.addf %92, %94 : vector<8x128xf32>
    %96 = vector.extract_strided_slice %95 {offsets = [0, 0], sizes = [8, 96], strides = [1, 1]} : vector<8x128xf32> to vector<8x96xf32>
    %97 = arith.negf %96 : vector<8x96xf32>
    %98 = math.exp %97 : vector<8x96xf32>
    %cst_30 = arith.constant 1.000000e+00 : f32
    %99 = vector.broadcast %cst_30 : f32 to vector<8x96xf32>
    %100 = arith.addf %99, %98 : vector<8x96xf32>
    %101 = arith.divf %99, %100 : vector<8x96xf32>
    %102 = vector.extract_strided_slice %101 {offsets = [0, 0], sizes = [8, 32], strides = [1, 1]} : vector<8x96xf32> to vector<8x32xf32>
    %103 = vector.extract_strided_slice %101 {offsets = [0, 32], sizes = [8, 32], strides = [1, 1]} : vector<8x96xf32> to vector<8x32xf32>
    %104 = vector.extract_strided_slice %101 {offsets = [0, 64], sizes = [8, 32], strides = [1, 1]} : vector<8x96xf32> to vector<8x32xf32>
    %105 = vector.extract_strided_slice %95 {offsets = [0, 96], sizes = [8, 32], strides = [1, 1]} : vector<8x128xf32> to vector<8x32xf32>
    %106 = math.tanh %105 : vector<8x32xf32>
    %107 = arith.mulf %103, %89 : vector<8x32xf32>
    %108 = arith.mulf %102, %106 : vector<8x32xf32>
    %109 = arith.addf %107, %108 : vector<8x32xf32>
    %110 = math.tanh %109 : vector<8x32xf32>
    %111 = arith.mulf %104, %110 : vector<8x32xf32>
    %112 = vector.extract_strided_slice %9 {offsets = [40, 0], sizes = [8, 128], strides = [1, 1]} : vector<64x128xf32> to vector<8x128xf32>
    %c0_31 = arith.constant 0 : index
    %c0_32 = arith.constant 0 : index
    %113 = vector.load %arg4[%c0_31, %c0_32] : memref<32x128xf32, #tpu.memory_space<vmem>>, vector<32x128xf32>
    %cst_33 = arith.constant dense<0.000000e+00> : vector<8x128xf32>
    %114 = tpu.matmul %111, %113, %cst_33 {dimension_numbers = #tpu.dot_dimension_numbers<[1], [0], [0], [1], [0, 0, 1, 1], [], []>} : vector<8x32xf32>, vector<32x128xf32>, vector<8x128xf32> -> vector<8x128xf32>
    %115 = arith.addf %112, %114 : vector<8x128xf32>
    %116 = vector.extract_strided_slice %115 {offsets = [0, 0], sizes = [8, 96], strides = [1, 1]} : vector<8x128xf32> to vector<8x96xf32>
    %117 = arith.negf %116 : vector<8x96xf32>
    %118 = math.exp %117 : vector<8x96xf32>
    %cst_34 = arith.constant 1.000000e+00 : f32
    %119 = vector.broadcast %cst_34 : f32 to vector<8x96xf32>
    %120 = arith.addf %119, %118 : vector<8x96xf32>
    %121 = arith.divf %119, %120 : vector<8x96xf32>
    %122 = vector.extract_strided_slice %121 {offsets = [0, 0], sizes = [8, 32], strides = [1, 1]} : vector<8x96xf32> to vector<8x32xf32>
    %123 = vector.extract_strided_slice %121 {offsets = [0, 32], sizes = [8, 32], strides = [1, 1]} : vector<8x96xf32> to vector<8x32xf32>
    %124 = vector.extract_strided_slice %121 {offsets = [0, 64], sizes = [8, 32], strides = [1, 1]} : vector<8x96xf32> to vector<8x32xf32>
    %125 = vector.extract_strided_slice %115 {offsets = [0, 96], sizes = [8, 32], strides = [1, 1]} : vector<8x128xf32> to vector<8x32xf32>
    %126 = math.tanh %125 : vector<8x32xf32>
    %127 = arith.mulf %123, %109 : vector<8x32xf32>
    %128 = arith.mulf %122, %126 : vector<8x32xf32>
    %129 = arith.addf %127, %128 : vector<8x32xf32>
    %130 = math.tanh %129 : vector<8x32xf32>
    %131 = arith.mulf %124, %130 : vector<8x32xf32>
    %132 = vector.extract_strided_slice %9 {offsets = [48, 0], sizes = [8, 128], strides = [1, 1]} : vector<64x128xf32> to vector<8x128xf32>
    %c0_35 = arith.constant 0 : index
    %c0_36 = arith.constant 0 : index
    %133 = vector.load %arg4[%c0_35, %c0_36] : memref<32x128xf32, #tpu.memory_space<vmem>>, vector<32x128xf32>
    %cst_37 = arith.constant dense<0.000000e+00> : vector<8x128xf32>
    %134 = tpu.matmul %131, %133, %cst_37 {dimension_numbers = #tpu.dot_dimension_numbers<[1], [0], [0], [1], [0, 0, 1, 1], [], []>} : vector<8x32xf32>, vector<32x128xf32>, vector<8x128xf32> -> vector<8x128xf32>
    %135 = arith.addf %132, %134 : vector<8x128xf32>
    %136 = vector.extract_strided_slice %135 {offsets = [0, 0], sizes = [8, 96], strides = [1, 1]} : vector<8x128xf32> to vector<8x96xf32>
    %137 = arith.negf %136 : vector<8x96xf32>
    %138 = math.exp %137 : vector<8x96xf32>
    %cst_38 = arith.constant 1.000000e+00 : f32
    %139 = vector.broadcast %cst_38 : f32 to vector<8x96xf32>
    %140 = arith.addf %139, %138 : vector<8x96xf32>
    %141 = arith.divf %139, %140 : vector<8x96xf32>
    %142 = vector.extract_strided_slice %141 {offsets = [0, 0], sizes = [8, 32], strides = [1, 1]} : vector<8x96xf32> to vector<8x32xf32>
    %143 = vector.extract_strided_slice %141 {offsets = [0, 32], sizes = [8, 32], strides = [1, 1]} : vector<8x96xf32> to vector<8x32xf32>
    %144 = vector.extract_strided_slice %141 {offsets = [0, 64], sizes = [8, 32], strides = [1, 1]} : vector<8x96xf32> to vector<8x32xf32>
    %145 = vector.extract_strided_slice %135 {offsets = [0, 96], sizes = [8, 32], strides = [1, 1]} : vector<8x128xf32> to vector<8x32xf32>
    %146 = math.tanh %145 : vector<8x32xf32>
    %147 = arith.mulf %143, %129 : vector<8x32xf32>
    %148 = arith.mulf %142, %146 : vector<8x32xf32>
    %149 = arith.addf %147, %148 : vector<8x32xf32>
    %150 = math.tanh %149 : vector<8x32xf32>
    %151 = arith.mulf %144, %150 : vector<8x32xf32>
    %152 = vector.extract_strided_slice %9 {offsets = [56, 0], sizes = [8, 128], strides = [1, 1]} : vector<64x128xf32> to vector<8x128xf32>
    %c0_39 = arith.constant 0 : index
    %c0_40 = arith.constant 0 : index
    %153 = vector.load %arg4[%c0_39, %c0_40] : memref<32x128xf32, #tpu.memory_space<vmem>>, vector<32x128xf32>
    %cst_41 = arith.constant dense<0.000000e+00> : vector<8x128xf32>
    %154 = tpu.matmul %151, %153, %cst_41 {dimension_numbers = #tpu.dot_dimension_numbers<[1], [0], [0], [1], [0, 0, 1, 1], [], []>} : vector<8x32xf32>, vector<32x128xf32>, vector<8x128xf32> -> vector<8x128xf32>
    %155 = arith.addf %152, %154 : vector<8x128xf32>
    %156 = vector.extract_strided_slice %155 {offsets = [0, 0], sizes = [8, 96], strides = [1, 1]} : vector<8x128xf32> to vector<8x96xf32>
    %157 = arith.negf %156 : vector<8x96xf32>
    %158 = math.exp %157 : vector<8x96xf32>
    %cst_42 = arith.constant 1.000000e+00 : f32
    %159 = vector.broadcast %cst_42 : f32 to vector<8x96xf32>
    %160 = arith.addf %159, %158 : vector<8x96xf32>
    %161 = arith.divf %159, %160 : vector<8x96xf32>
    %162 = vector.extract_strided_slice %161 {offsets = [0, 0], sizes = [8, 32], strides = [1, 1]} : vector<8x96xf32> to vector<8x32xf32>
    %163 = vector.extract_strided_slice %161 {offsets = [0, 32], sizes = [8, 32], strides = [1, 1]} : vector<8x96xf32> to vector<8x32xf32>
    %164 = vector.extract_strided_slice %161 {offsets = [0, 64], sizes = [8, 32], strides = [1, 1]} : vector<8x96xf32> to vector<8x32xf32>
    %165 = vector.extract_strided_slice %155 {offsets = [0, 96], sizes = [8, 32], strides = [1, 1]} : vector<8x128xf32> to vector<8x32xf32>
    %166 = math.tanh %165 : vector<8x32xf32>
    %167 = arith.mulf %163, %149 : vector<8x32xf32>
    %168 = arith.mulf %162, %166 : vector<8x32xf32>
    %169 = arith.addf %167, %168 : vector<8x32xf32>
    %170 = math.tanh %169 : vector<8x32xf32>
    %171 = arith.mulf %164, %170 : vector<8x32xf32>
    %c0_43 = arith.constant 0 : index
    %c0_44 = arith.constant 0 : index
    %172 = vector.load %arg9[%c0_43, %c0_44] : memref<8x32xf32, #tpu.memory_space<vmem>>, vector<8x32xf32>
    tpu.vector_store %arg9[%c0_43, %c0_44], %171 {strides = array<i32>} : memref<8x32xf32, #tpu.memory_space<vmem>>, vector<8x32xf32>,
    %c0_45 = arith.constant 0 : index
    %c0_46 = arith.constant 0 : index
    %173 = vector.load %arg10[%c0_45, %c0_46] : memref<8x32xf32, #tpu.memory_space<vmem>>, vector<8x32xf32>
    tpu.vector_store %arg10[%c0_45, %c0_46], %169 {strides = array<i32>} : memref<8x32xf32, #tpu.memory_space<vmem>>, vector<8x32xf32>,
    %c0_i32_47 = arith.constant 0 : i32
    %174 = arith.cmpi eq, %arg1, %c0_i32_47 : i32
    %175 = arith.extui %174 : i1 to i32
    %c0_i32_48 = arith.constant 0 : i32
    %176 = arith.cmpi ne, %175, %c0_i32_48 : i32
    scf.if %176 {
      %c0_49 = arith.constant 0 : index
      %c0_50 = arith.constant 0 : index
      %177 = vector.load %arg6[%c0_49, %c0_50] : memref<32x128xf32, #tpu.memory_space<vmem>>, vector<32x128xf32>
      %cst_51 = arith.constant dense<0.000000e+00> : vector<8x128xf32>
      %178 = tpu.matmul %171, %177, %cst_51 {dimension_numbers = #tpu.dot_dimension_numbers<[1], [0], [0], [1], [0, 0, 1, 1], [], []>} : vector<8x32xf32>, vector<32x128xf32>, vector<8x128xf32> -> vector<8x128xf32>
      %c0_52 = arith.constant 0 : index
      %c0_53 = arith.constant 0 : index
      %179 = vector.load %arg7[%c0_52, %c0_53] : memref<1x128xf32, #tpu.memory_space<vmem>>, vector<1x128xf32>
      %180 = vector.broadcast %179 : vector<1x128xf32> to vector<8x128xf32>
      %181 = arith.addf %178, %180 : vector<8x128xf32>
      %c0_54 = arith.constant 0 : index
      %c0_55 = arith.constant 0 : index
      %182 = vector.load %arg8[%c0_54, %c0_55] : memref<8x128xf32, #tpu.memory_space<vmem>>, vector<8x128xf32>
      tpu.vector_store %arg8[%c0_54, %c0_55], %181 {strides = array<i32>} : memref<8x128xf32, #tpu.memory_space<vmem>>, vector<8x128xf32>,
    } else {
    }
    return
  }
  func.func @transform_0(%arg0: i32, %arg1: i32) -> (i32, i32, i32) {
    %c0_i32 = arith.constant 0 : i32
    %c0_i32_0 = arith.constant 0 : i32
    return %arg1, %arg0, %c0_i32 : i32, i32, i32
  }
  func.func @transform_1(%arg0: i32, %arg1: i32) -> (i32, i32) {
    %c0_i32 = arith.constant 0 : i32
    %c0_i32_0 = arith.constant 0 : i32
    %c0_i32_1 = arith.constant 0 : i32
    return %c0_i32, %c0_i32_0 : i32, i32
  }
  func.func @transform_2(%arg0: i32, %arg1: i32) -> (i32, i32) {
    %c0_i32 = arith.constant 0 : i32
    %c0_i32_0 = arith.constant 0 : i32
    %c0_i32_1 = arith.constant 0 : i32
    return %c0_i32, %c0_i32_0 : i32, i32
  }
  func.func @transform_3(%arg0: i32, %arg1: i32) -> (i32, i32) {
    %c0_i32 = arith.constant 0 : i32
    %c0_i32_0 = arith.constant 0 : i32
    %c0_i32_1 = arith.constant 0 : i32
    return %c0_i32, %c0_i32_0 : i32, i32
  }
  func.func @transform_4(%arg0: i32, %arg1: i32) -> (i32, i32) {
    %c0_i32 = arith.constant 0 : i32
    %c0_i32_0 = arith.constant 0 : i32
    %c0_i32_1 = arith.constant 0 : i32
    return %c0_i32, %c0_i32_0 : i32, i32
  }
  func.func @transform_5(%arg0: i32, %arg1: i32) -> (i32, i32) {
    %c0_i32 = arith.constant 0 : i32
    %c0_i32_0 = arith.constant 0 : i32
    %c0_i32_1 = arith.constant 0 : i32
    return %c0_i32, %c0_i32_0 : i32, i32
  }
  func.func @transform_6(%arg0: i32, %arg1: i32) -> (i32, i32) {
    %c0_i32 = arith.constant 0 : i32
    %c0_i32_0 = arith.constant 0 : i32
    return %arg0, %c0_i32 : i32, i32
  }
}

</mosaic_0001>

<llo_original>
// kernel: tpu_custom_call.1
$region0: #{tpu_custom_call.1}
  #allocation0 [shape = 'u32[]', space=smem, size = 0x4, offset = 0x4, fixed_abs, tag = 'smem constant byte address 0x4 - core index']
  #allocation1 [shape = 'u32[144,128]{1,0:T(1,128)}', space=vmem, size = 0x12000, scoped, tag = 'internal scratch']
  #allocation2 [shape = 'f32[8,32]{1,0:T(8,128)}', space=vmem, size = 0x1000, scoped, tag = 'scratch operand']
  #allocation3 [shape = 'f32[8,32]{1,0:T(8,128)}', space=vmem, size = 0x1000, scoped, tag = 'scratch operand']
  #allocation4 [shape = 'f32[8,8,128]{2,1,0:T(8,128)}', space=vmem, size = 0x8000, scoped, tag = 'scratch operand']
  %s0 = inlined_call_operand.hbm [shape: f32[8,8,16], index: 0, kind: input, shape index: {}]
  %s1 = inlined_call_operand.hbm [shape: f32[16,128], index: 1, kind: input, shape index: {}]
  %s2 = inlined_call_operand.hbm [shape: f32[32,128], index: 2, kind: input, shape index: {}]
  %s3 = inlined_call_operand.vmem [shape: f32[1,128], index: 3, kind: input, shape index: {}]
  %s4 = inlined_call_operand.hbm [shape: f32[32,128], index: 4, kind: input, shape index: {}]
  %s5 = inlined_call_operand.vmem [shape: f32[1,128], index: 5, kind: input, shape index: {}]
  %s6 = inlined_call_operand.hbm [shape: f32[8,128], index: 6, kind: output, shape index: {}]
  %s7 = sld [smem:[#allocation0]]
  $region58: #{tpu_custom_call.1} parent=0
    _
  %s9 = ssub.s32 1, %s7
  %s10 = scalar_select 0, %s9, %s7
  $region1: #{tpu_custom_call.1} parent=0
    #allocation5 [shape = 'u8[32768]{0}', space=vmem, size = 0x8000, scoped, tag = 'input window, operand 0, single buffered']
    #allocation6 [shape = 's32[1]{0}', space=sflag, size = 0x4, scoped, tag = 'scoped memory for tpu_custom_call.1']
    #allocation7 [shape = 's32[1]{0}', space=sflag, size = 0x4, scoped, tag = 'scoped memory for tpu_custom_call.1']
    #allocation8 [shape = 'u8[8192]{0}', space=vmem, size = 0x2000, scoped, tag = 'input window, operand 1, single buffered']
    #allocation9 [shape = 's32[1]{0}', space=sflag, size = 0x4, scoped, tag = 'scoped memory for tpu_custom_call.1']
    #allocation10 [shape = 'u8[16384]{0}', space=vmem, size = 0x4000, scoped, tag = 'input window, operand 2, single buffered']
    #allocation11 [shape = 'u8[16384]{0}', space=vmem, size = 0x4000, scoped, tag = 'input window, operand 4, single buffered']
    #allocation12 [shape = 's32[1]{0}', space=sflag, size = 0x4, scoped, tag = 'scoped memory for tpu_custom_call.1']
    #allocation13 [shape = 'u8[4096]{0}', space=vmem, size = 0x1000, scoped, tag = 'output window, operand 0, single buffered']
    %11 = vsyncpa [#allocation6], 0
    %12 = vsyncpa [#allocation9], 0
    %13 = vsyncpa [#allocation12], 0
    %14 = vsyncpa [#allocation7], 0
    // Predicated region
    $region2: #{tpu_custom_call.1} parent=1 // pred_check
      _
    $region3: #{tpu_custom_call.1} parent=1 // pred_check_branch
      %16 = sbr.rel (0) target = $region5
    $region4: #{tpu_custom_call.1} parent=1 // pred_region
      %s18 = ssub.s32 1024, 1024
      %19 = vsyncadd [#allocation6], %s18
      %s20 = sshll.u32 [#allocation5], 4
      %s21 = int_to_ptr.vmem [resolvable:$true] %s20
      %26 = dma.hbm_to_vmem [thread:$0]  %s0, 1024, %s21, [#allocation6], 128, 128, 8
    $region5: #{tpu_custom_call.1} parent=1 // pred_fallthru
      _
    // Predicated region
    $region6: #{tpu_custom_call.1} parent=1 // pred_check
      _
    $region7: #{tpu_custom_call.1} parent=1 // pred_check_branch
      %28 = sbr.rel (0) target = $region9
    $region8: #{tpu_custom_call.1} parent=1 // pred_region
      %s30 = ssub.s32 256, 256
      %31 = vsyncadd [#allocation9], %s30
      %s32 = sshll.u32 [#allocation8], 4
      %s33 = int_to_ptr.vmem [resolvable:$true] %s32
      %38 = dma.hbm_to_vmem [thread:$0]  %s1, 256, %s33, [#allocation9], 128, 128, 8
    $region9: #{tpu_custom_call.1} parent=1 // pred_fallthru
      _
    // Predicated region
    $region10: #{tpu_custom_call.1} parent=1 // pred_check
      _
    $region11: #{tpu_custom_call.1} parent=1 // pred_check_branch
      %40 = sbr.rel (0) target = $region13
    $region12: #{tpu_custom_call.1} parent=1 // pred_region
      %s42 = ssub.s32 512, 512
      %43 = vsyncadd [#allocation9], %s42
      %s44 = sshll.u32 [#allocation10], 4
      %s45 = int_to_ptr.vmem [resolvable:$true] %s44
      %50 = dma.hbm_to_vmem [thread:$0]  %s2, 512, %s45, [#allocation9], 128, 128, 8
    $region13: #{tpu_custom_call.1} parent=1 // pred_fallthru
      _
    // Predicated region
    $region14: #{tpu_custom_call.1} parent=1 // pred_check
      _
    $region15: #{tpu_custom_call.1} parent=1 // pred_check_branch
      %52 = sbr.rel (0) target = $region17
    $region16: #{tpu_custom_call.1} parent=1 // pred_region
      _
    $region17: #{tpu_custom_call.1} parent=1 // pred_fallthru
      _
    // Predicated region
    $region18: #{tpu_custom_call.1} parent=1 // pred_check
      _
    $region19: #{tpu_custom_call.1} parent=1 // pred_check_branch
      %54 = sbr.rel (0) target = $region21
    $region20: #{tpu_custom_call.1} parent=1 // pred_region
      %s56 = ssub.s32 512, 512
      %57 = vsyncadd [#allocation12], %s56
      %s58 = sshll.u32 [#allocation11], 4
      %s59 = int_to_ptr.vmem [resolvable:$true] %s58
      %64 = dma.hbm_to_vmem [thread:$0]  %s4, 512, %s59, [#allocation12], 128, 128, 8
    $region21: #{tpu_custom_call.1} parent=1 // pred_fallthru
      _
    // Predicated region
    $region22: #{tpu_custom_call.1} parent=1 // pred_check
      _
    $region23: #{tpu_custom_call.1} parent=1 // pred_check_branch
      %66 = sbr.rel (0) target = $region25
    $region24: #{tpu_custom_call.1} parent=1 // pred_region
      _
    $region25: #{tpu_custom_call.1} parent=1 // pred_fallthru
      _
    // Predicated region
    $region26: #{tpu_custom_call.1} parent=1 // pred_check
      _
    $region27: #{tpu_custom_call.1} parent=1 // pred_check_branch
      %68 = sbr.rel (0) target = $region29
    $region28: #{tpu_custom_call.1} parent=1 // pred_region
      %69 = dma.done [#allocation6], 1024
    $region29: #{tpu_custom_call.1} parent=1 // pred_fallthru
      _
    // Predicated region
    $region30: #{tpu_custom_call.1} parent=1 // pred_check
      _
    $region31: #{tpu_custom_call.1} parent=1 // pred_check_branch
      %71 = sbr.rel (0) target = $region33
    $region32: #{tpu_custom_call.1} parent=1 // pred_region
      %72 = dma.done [#allocation9], 256
    $region33: #{tpu_custom_call.1} parent=1 // pred_fallthru
      _
    // Predicated region
    $region34: #{tpu_custom_call.1} parent=1 // pred_check
      _
    $region35: #{tpu_custom_call.1} parent=1 // pred_check_branch
      %74 = sbr.rel (0) target = $region37
    $region36: #{tpu_custom_call.1} parent=1 // pred_region
      %75 = dma.done [#allocation9], 512
    $region37: #{tpu_custom_call.1} parent=1 // pred_fallthru
      _
    // Predicated region
    $region38: #{tpu_custom_call.1} parent=1 // pred_check
      _
    $region39: #{tpu_custom_call.1} parent=1 // pred_check_branch
      %77 = sbr.rel (0) target = $region41
    $region40: #{tpu_custom_call.1} parent=1 // pred_region
      %78 = dma.done [#allocation12], 512
    $region41: #{tpu_custom_call.1} parent=1 // pred_fallthru
      _
    %p79 = scmp.eq.s32.totalorder 0, 0
    // Predicated region
    $region42: #{tpu_custom_call.1} parent=1 // pred_check
      %p80 = pneg %p79
    $region43: #{tpu_custom_call.1} parent=1 // pred_check_branch
      %82 = sbr.rel (%p80) target = $region45
    $region44: #{tpu_custom_call.1} parent=1 // pred_region
      %vm83 = vcmask 261120
      %84 = vst.msk [vmem:[#allocation2] sm:$0xff] %vm83, 0.0
      %85 = vst.msk [vmem:[#allocation3] sm:$0xff] %vm83, 0.0
    $region45: #{tpu_custom_call.1} parent=1 // pred_fallthru
      _
    %v86 = vld [vmem:[#allocation5] sm:$0xff]
    %v87 = vld [vmem:[#allocation5 + $0x8] sm:$0xff]
    %v88 = vld [vmem:[#allocation5 + $0x10] sm:$0xff]
    %v89 = vld [vmem:[#allocation5 + $0x18] sm:$0xff]
    %v90 = vld [vmem:[#allocation5 + $0x20] sm:$0xff]
    %v91 = vld [vmem:[#allocation5 + $0x28] sm:$0xff]
    %v92 = vld [vmem:[#allocation5 + $0x30] sm:$0xff]
    %v93 = vld [vmem:[#allocation5 + $0x38] sm:$0xff]
    %v94 = vld [vmem:[#allocation8] sm:$0xff]
    %v95 = vld [vmem:[#allocation8 + $0x8] sm:$0xff]
    %v96 = vld [vmem:[%s3] sm:$0x1]
    %v98 = vlaneseq
    %v99 = vshrl.u32 %v98, 7
    %v100 = vsub.s32 0, %v99
    %v101 = vrot.slane %v96, %v100
    %vm103 = vcmask 130048
    %v105 = vsel %vm103, %v86, 0
    %v108 = vsel %vm103, %v87, 0
    %v111 = vsel %vm103, %v88, 0
    %v114 = vsel %vm103, %v89, 0
    %v117 = vsel %vm103, %v90, 0
    %v120 = vsel %vm103, %v91, 0
    %v123 = vsel %vm103, %v92, 0
    %v126 = vsel %vm103, %v93, 0
    %128 = vmatprep.subr.mxu0 0.0
    %129 = vmatpush1.msra.mxu0 %v94
    %130 = vmatprep.subr.mxu0 0.0
    %131 = vmatpush1.msra.mxu0 %v95
    %132 = vmatprep.subr.mxu0 0.0
    %133 = vmatpush1.msra.mxu0 0.0
    %134 = vmatprep.subr.mxu0 0.0
    %135 = vmatpush1.msra.mxu0 0.0
    %136 = vmatprep.subr.mxu0 0.0
    %137 = vmatpush1.msra.mxu0 0.0
    %138 = vmatprep.subr.mxu0 0.0
    %139 = vmatpush1.msra.mxu0 0.0
    %140 = vmatprep.subr.mxu0 0.0
    %141 = vmatpush1.msra.mxu0 0.0
    %142 = vmatprep.subr.mxu0 0.0
    %143 = vmatpush1.msra.mxu0 0.0
    %144 = vmatprep.subr.mxu0 0.0
    %145 = vmatpush1.msra.mxu0 0.0
    %146 = vmatprep.subr.mxu0 0.0
    %147 = vmatpush1.msra.mxu0 0.0
    %148 = vmatprep.subr.mxu0 0.0
    %149 = vmatpush1.msra.mxu0 0.0
    %150 = vmatprep.subr.mxu0 0.0
    %151 = vmatpush1.msra.mxu0 0.0
    %152 = vmatprep.subr.mxu0 0.0
    %153 = vmatpush1.msra.mxu0 0.0
    %154 = vmatprep.subr.mxu0 0.0
    %155 = vmatpush1.msra.mxu0 0.0
    %156 = vmatprep.subr.mxu0 0.0
    %157 = vmatpush1.msra.mxu0 0.0
    %158 = vmatprep.subr.mxu0 0.0
    %159 = vmatpush1.msra.mxu0 0.0
    %160 = vmatprep.subr.mxu0 0.0
    %161 = vmatpush1.msra.mxu0 0.0
    %162 = vmatprep.subr.mxu0 0.0
    %163 = vmatpush1.msra.mxu0 0.0
    %164 = vmatprep.subr.mxu0 0.0
    %165 = vmatpush1.msra.mxu0 0.0
    %166 = vmatprep.subr.mxu0 0.0
    %167 = vmatpush1.msra.mxu0 0.0
    %168 = vmatprep.subr.mxu0 0.0
    %169 = vmatpush1.msra.mxu0 0.0
    %170 = vmatprep.subr.mxu0 0.0
    %171 = vmatpush1.msra.mxu0 0.0
    %172 = vmatprep.subr.mxu0 0.0
    %173 = vmatpush1.msra.mxu0 0.0
    %174 = vmatprep.subr.mxu0 0.0
    %175 = vmatpush1.msra.mxu0 0.0
    %176 = vmatprep.subr.mxu0 0.0
    %177 = vmatpush1.msra.mxu0 0.0
    %178 = vmatprep.subr.mxu0 0.0
    %179 = vmatpush1.msra.mxu0 0.0
    %180 = vmatprep.subr.mxu0 0.0
    %181 = vmatpush1.msra.mxu0 0.0
    %182 = vmatprep.subr.mxu0 0.0
    %183 = vmatpush1.msra.mxu0 0.0
    %184 = vmatprep.subr.mxu0 0.0
    %185 = vmatpush1.msra.mxu0 0.0
    %186 = vmatprep.subr.mxu0 0.0
    %187 = vmatpush1.msra.mxu0 0.0
    %188 = vmatprep.subr.mxu0 0.0
    %189 = vmatpush1.msra.mxu0 0.0
    %190 = vmatprep.subr.mxu0 0.0
    %191 = vmatpush1.msra.mxu0 0.0
    %192 = vmatprep.mubr.f32.mxu0 0.0
    %193 = vmatmul.mubr.f32.gmra.mrb[0].mxu0 %v105
    %v194 = vpop.f32.mrb[0].mxu0
    %v195 = vadd.f32 %v101, %v194
    %v196 = vpop.f32.mrb[0].mxu0
    %197 = vmatprep.mubr.f32.mxu0 0.0
    %198 = vmatmul.mubr.f32.gmra.mrb[0].mxu0 %v108
    %v199 = vpop.f32.mrb[0].mxu0
    %v200 = vadd.f32 %v101, %v199
    %v201 = vpop.f32.mrb[0].mxu0
    %202 = vmatprep.mubr.f32.mxu0 0.0
    %203 = vmatmul.mubr.f32.gmra.mrb[0].mxu0 %v111
    %v204 = vpop.f32.mrb[0].mxu0
    %v205 = vadd.f32 %v101, %v204
    %v206 = vpop.f32.mrb[0].mxu0
    %207 = vmatprep.mubr.f32.mxu0 0.0
    %208 = vmatmul.mubr.f32.gmra.mrb[0].mxu0 %v114
    %v209 = vpop.f32.mrb[0].mxu0
    %v210 = vadd.f32 %v101, %v209
    %v211 = vpop.f32.mrb[0].mxu0
    %212 = vmatprep.mubr.f32.mxu0 0.0
    %213 = vmatmul.mubr.f32.gmra.mrb[0].mxu0 %v117
    %v214 = vpop.f32.mrb[0].mxu0
    %v215 = vadd.f32 %v101, %v214
    %v216 = vpop.f32.mrb[0].mxu0
    %217 = vmatprep.mubr.f32.mxu0 0.0
    %218 = vmatmul.mubr.f32.gmra.mrb[0].mxu0 %v120
    %v219 = vpop.f32.mrb[0].mxu0
    %v220 = vadd.f32 %v101, %v219
    %v221 = vpop.f32.mrb[0].mxu0
    %222 = vmatprep.mubr.f32.mxu0 0.0
    %223 = vmatmul.mubr.f32.gmra.mrb[0].mxu0 %v123
    %v224 = vpop.f32.mrb[0].mxu0
    %v225 = vadd.f32 %v101, %v224
    %v226 = vpop.f32.mrb[0].mxu0
    %227 = vmatprep.mubr.f32.mxu0 0.0
    %228 = vmatmul.mubr.f32.gmra.mrb[0].mxu0 %v126
    %v229 = vpop.f32.mrb[0].mxu0
    %v230 = vadd.f32 %v101, %v229
    %v231 = vpop.f32.mrb[0].mxu0
    %232 = vdwg.mxu0
    %v233 = vld [vmem:[#allocation2] sm:$0xff]
    %v234 = vld [vmem:[#allocation3] sm:$0xff]
    %v235 = vld [vmem:[#allocation10] sm:$0xff]
    %v236 = vld [vmem:[#allocation10 + $0x8] sm:$0xff]
    %v237 = vld [vmem:[#allocation10 + $0x10] sm:$0xff]
    %v238 = vld [vmem:[#allocation10 + $0x18] sm:$0xff]
    %vm239 = vcmask 261120
    %v241 = vsel %vm239, %v233, 0
    %243 = vmatprep.subr.mxu0 0.0
    %244 = vmatpush1.msra.mxu0 %v235
    %245 = vmatprep.subr.mxu0 0.0
    %246 = vmatpush1.msra.mxu0 %v236
    %247 = vmatprep.subr.mxu0 0.0
    %248 = vmatpush1.msra.mxu0 %v237
    %249 = vmatprep.subr.mxu0 0.0
    %250 = vmatpush1.msra.mxu0 %v238
    %251 = vmatprep.subr.mxu0 0.0
    %252 = vmatpush1.msra.mxu0 0.0
    %253 = vmatprep.subr.mxu0 0.0
    %254 = vmatpush1.msra.mxu0 0.0
    %255 = vmatprep.subr.mxu0 0.0
    %256 = vmatpush1.msra.mxu0 0.0
    %257 = vmatprep.subr.mxu0 0.0
    %258 = vmatpush1.msra.mxu0 0.0
    %259 = vmatprep.subr.mxu0 0.0
    %260 = vmatpush1.msra.mxu0 0.0
    %261 = vmatprep.subr.mxu0 0.0
    %262 = vmatpush1.msra.mxu0 0.0
    %263 = vmatprep.subr.mxu0 0.0
    %264 = vmatpush1.msra.mxu0 0.0
    %265 = vmatprep.subr.mxu0 0.0
    %266 = vmatpush1.msra.mxu0 0.0
    %267 = vmatprep.subr.mxu0 0.0
    %268 = vmatpush1.msra.mxu0 0.0
    %269 = vmatprep.subr.mxu0 0.0
    %270 = vmatpush1.msra.mxu0 0.0
    %271 = vmatprep.subr.mxu0 0.0
    %272 = vmatpush1.msra.mxu0 0.0
    %273 = vmatprep.subr.mxu0 0.0
    %274 = vmatpush1.msra.mxu0 0.0
    %275 = vmatprep.subr.mxu0 0.0
    %276 = vmatpush1.msra.mxu0 0.0
    %277 = vmatprep.subr.mxu0 0.0
    %278 = vmatpush1.msra.mxu0 0.0
    %279 = vmatprep.subr.mxu0 0.0
    %280 = vmatpush1.msra.mxu0 0.0
    %281 = vmatprep.subr.mxu0 0.0
    %282 = vmatpush1.msra.mxu0 0.0
    %283 = vmatprep.subr.mxu0 0.0
    %284 = vmatpush1.msra.mxu0 0.0
    %285 = vmatprep.subr.mxu0 0.0
    %286 = vmatpush1.msra.mxu0 0.0
    %287 = vmatprep.subr.mxu0 0.0
    %288 = vmatpush1.msra.mxu0 0.0
    %289 = vmatprep.subr.mxu0 0.0
    %290 = vmatpush1.msra.mxu0 0.0
    %291 = vmatprep.subr.mxu0 0.0
    %292 = vmatpush1.msra.mxu0 0.0
    %293 = vmatprep.subr.mxu0 0.0
    %294 = vmatpush1.msra.mxu0 0.0
    %295 = vmatprep.subr.mxu0 0.0
    %296 = vmatpush1.msra.mxu0 0.0
    %297 = vmatprep.subr.mxu0 0.0
    %298 = vmatpush1.msra.mxu0 0.0
    %299 = vmatprep.subr.mxu0 0.0
    %300 = vmatpush1.msra.mxu0 0.0
    %301 = vmatprep.subr.mxu0 0.0
    %302 = vmatpush1.msra.mxu0 0.0
    %303 = vmatprep.subr.mxu0 0.0
    %304 = vmatpush1.msra.mxu0 0.0
    %305 = vmatprep.subr.mxu0 0.0
    %306 = vmatpush1.msra.mxu0 0.0
    %307 = vmatprep.mubr.f32.mxu0 0.0
    %308 = vmatmul.mubr.f32.gmra.mrb[0].mxu0 %v241
    %v309 = vpop.f32.mrb[0].mxu0
    %v310 = vadd.f32 0.0, %v309
    %v311 = vpop.f32.mrb[0].mxu0
    %312 = vdwg.mxu0
    %v313 = vadd.f32 %v195, %v310
    %v314 = vxor.u32 %v313, 2147483648
    %v315 = vmul.f32 %v314, 1.442695
    %v316 = vpow.pop %v315
    %v317 = vadd.f32 %v316, 1.0
    %v318 = vrcp.pop %v317
    %v319 = vmul.f32 1.0, %v318
    %v320 = vtanh.pop %v313
    %322 = vrot.lane.b32.xlu0 %v234, 32
    %v323 = vpop.permute.xlu0 %322
    %v325 = vmul.f32 %v319, %v323
    %327 = vrot.lane.b32.xlu0 %v320, 32
    %v328 = vpop.permute.xlu0 %327
    %v330 = vmul.f32 %v319, %v328
    %332 = vrot.lane.b32.xlu0 %v330, 32
    %v333 = vpop.permute.xlu0 %332
    %v335 = vadd.f32 %v325, %v333
    %v336 = vtanh.pop %v335
    %338 = vrot.lane.b32.xlu0 %v336, 32
    %v339 = vpop.permute.xlu0 %338
    %v341 = vmul.f32 %v319, %v339
    %343 = vrot.lane.b32.xlu0 %v341, 64
    %v344 = vpop.permute.xlu0 %343
    %v345 = vsel %vm239, %v344, 0
    %347 = vmatprep.subr.mxu0 0.0
    %348 = vmatpush1.msra.mxu0 %v235
    %349 = vmatprep.subr.mxu0 0.0
    %350 = vmatpush1.msra.mxu0 %v236
    %351 = vmatprep.subr.mxu0 0.0
    %352 = vmatpush1.msra.mxu0 %v237
    %353 = vmatprep.subr.mxu0 0.0
    %354 = vmatpush1.msra.mxu0 %v238
    %355 = vmatprep.subr.mxu0 0.0
    %356 = vmatpush1.msra.mxu0 0.0
    %357 = vmatprep.subr.mxu0 0.0
    %358 = vmatpush1.msra.mxu0 0.0
    %359 = vmatprep.subr.mxu0 0.0
    %360 = vmatpush1.msra.mxu0 0.0
    %361 = vmatprep.subr.mxu0 0.0
    %362 = vmatpush1.msra.mxu0 0.0
    %363 = vmatprep.subr.mxu0 0.0
    %364 = vmatpush1.msra.mxu0 0.0
    %365 = vmatprep.subr.mxu0 0.0
    %366 = vmatpush1.msra.mxu0 0.0
    %367 = vmatprep.subr.mxu0 0.0
    %368 = vmatpush1.msra.mxu0 0.0
    %369 = vmatprep.subr.mxu0 0.0
    %370 = vmatpush1.msra.mxu0 0.0
    %371 = vmatprep.subr.mxu0 0.0
    %372 = vmatpush1.msra.mxu0 0.0
    %373 = vmatprep.subr.mxu0 0.0
    %374 = vmatpush1.msra.mxu0 0.0
    %375 = vmatprep.subr.mxu0 0.0
    %376 = vmatpush1.msra.mxu0 0.0
    %377 = vmatprep.subr.mxu0 0.0
    %378 = vmatpush1.msra.mxu0 0.0
    %379 = vmatprep.subr.mxu0 0.0
    %380 = vmatpush1.msra.mxu0 0.0
    %381 = vmatprep.subr.mxu0 0.0
    %382 = vmatpush1.msra.mxu0 0.0
    %383 = vmatprep.subr.mxu0 0.0
    %384 = vmatpush1.msra.mxu0 0.0
    %385 = vmatprep.subr.mxu0 0.0
    %386 = vmatpush1.msra.mxu0 0.0
    %387 = vmatprep.subr.mxu0 0.0
    %388 = vmatpush1.msra.mxu0 0.0
    %389 = vmatprep.subr.mxu0 0.0
    %390 = vmatpush1.msra.mxu0 0.0
    %391 = vmatprep.subr.mxu0 0.0
    %392 = vmatpush1.msra.mxu0 0.0
    %393 = vmatprep.subr.mxu0 0.0
    %394 = vmatpush1.msra.mxu0 0.0
    %395 = vmatprep.subr.mxu0 0.0
    %396 = vmatpush1.msra.mxu0 0.0
    %397 = vmatprep.subr.mxu0 0.0
    %398 = vmatpush1.msra.mxu0 0.0
    %399 = vmatprep.subr.mxu0 0.0
    %400 = vmatpush1.msra.mxu0 0.0
    %401 = vmatprep.subr.mxu0 0.0
    %402 = vmatpush1.msra.mxu0 0.0
    %403 = vmatprep.subr.mxu0 0.0
    %404 = vmatpush1.msra.mxu0 0.0
    %405 = vmatprep.subr.mxu0 0.0
    %406 = vmatpush1.msra.mxu0 0.0
    %407 = vmatprep.subr.mxu0 0.0
    %408 = vmatpush1.msra.mxu0 0.0
    %409 = vmatprep.subr.mxu0 0.0
    %410 = vmatpush1.msra.mxu0 0.0
    %411 = vmatprep.mubr.f32.mxu0 0.0
    %412 = vmatmul.mubr.f32.gmra.mrb[0].mxu0 %v345
    %v413 = vpop.f32.mrb[0].mxu0
    %v414 = vadd.f32 0.0, %v413
    %v415 = vpop.f32.mrb[0].mxu0
    %416 = vdwg.mxu0
    %v417 = vadd.f32 %v200, %v414
    %v418 = vxor.u32 %v417, 2147483648
    %v419 = vmul.f32 %v418, 1.442695
    %v420 = vpow.pop %v419
    %v421 = vadd.f32 %v420, 1.0
    %v422 = vrcp.pop %v421
    %v423 = vmul.f32 1.0, %v422
    %v424 = vtanh.pop %v417
    %v425 = vmul.f32 %v423, %v335
    %427 = vrot.lane.b32.xlu0 %v424, 32
    %v428 = vpop.permute.xlu0 %427
    %v430 = vmul.f32 %v423, %v428
    %432 = vrot.lane.b32.xlu0 %v430, 32
    %v433 = vpop.permute.xlu0 %432
    %v435 = vadd.f32 %v425, %v433
    %v436 = vtanh.pop %v435
    %438 = vrot.lane.b32.xlu0 %v436, 32
    %v439 = vpop.permute.xlu0 %438
    %v441 = vmul.f32 %v423, %v439
    %443 = vrot.lane.b32.xlu0 %v441, 64
    %v444 = vpop.permute.xlu0 %443
    %v445 = vsel %vm239, %v444, 0
    %447 = vmatprep.subr.mxu0 0.0
    %448 = vmatpush1.msra.mxu0 %v235
    %449 = vmatprep.subr.mxu0 0.0
    %450 = vmatpush1.msra.mxu0 %v236
    %451 = vmatprep.subr.mxu0 0.0
    %452 = vmatpush1.msra.mxu0 %v237
    %453 = vmatprep.subr.mxu0 0.0
    %454 = vmatpush1.msra.mxu0 %v238
    %455 = vmatprep.subr.mxu0 0.0
    %456 = vmatpush1.msra.mxu0 0.0
    %457 = vmatprep.subr.mxu0 0.0
    %458 = vmatpush1.msra.mxu0 0.0
    %459 = vmatprep.subr.mxu0 0.0
    %460 = vmatpush1.msra.mxu0 0.0
    %461 = vmatprep.subr.mxu0 0.0
    %462 = vmatpush1.msra.mxu0 0.0
    %463 = vmatprep.subr.mxu0 0.0
    %464 = vmatpush1.msra.mxu0 0.0
    %465 = vmatprep.subr.mxu0 0.0
    %466 = vmatpush1.msra.mxu0 0.0
    %467 = vmatprep.subr.mxu0 0.0
    %468 = vmatpush1.msra.mxu0 0.0
    %469 = vmatprep.subr.mxu0 0.0
    %470 = vmatpush1.msra.mxu0 0.0
    %471 = vmatprep.subr.mxu0 0.0
    %472 = vmatpush1.msra.mxu0 0.0
    %473 = vmatprep.subr.mxu0 0.0
    %474 = vmatpush1.msra.mxu0 0.0
    %475 = vmatprep.subr.mxu0 0.0
    %476 = vmatpush1.msra.mxu0 0.0
    %477 = vmatprep.subr.mxu0 0.0
    %478 = vmatpush1.msra.mxu0 0.0
    %479 = vmatprep.subr.mxu0 0.0
    %480 = vmatpush1.msra.mxu0 0.0
    %481 = vmatprep.subr.mxu0 0.0
    %482 = vmatpush1.msra.mxu0 0.0
    %483 = vmatprep.subr.mxu0 0.0
    %484 = vmatpush1.msra.mxu0 0.0
    %485 = vmatprep.subr.mxu0 0.0
    %486 = vmatpush1.msra.mxu0 0.0
    %487 = vmatprep.subr.mxu0 0.0
    %488 = vmatpush1.msra.mxu0 0.0
    %489 = vmatprep.subr.mxu0 0.0
    %490 = vmatpush1.msra.mxu0 0.0
    %491 = vmatprep.subr.mxu0 0.0
    %492 = vmatpush1.msra.mxu0 0.0
    %493 = vmatprep.subr.mxu0 0.0
    %494 = vmatpush1.msra.mxu0 0.0
    %495 = vmatprep.subr.mxu0 0.0
    %496 = vmatpush1.msra.mxu0 0.0
    %497 = vmatprep.subr.mxu0 0.0
    %498 = vmatpush1.msra.mxu0 0.0
    %499 = vmatprep.subr.mxu0 0.0
    %500 = vmatpush1.msra.mxu0 0.0
    %501 = vmatprep.subr.mxu0 0.0
    %502 = vmatpush1.msra.mxu0 0.0
    %503 = vmatprep.subr.mxu0 0.0
    %504 = vmatpush1.msra.mxu0 0.0
    %505 = vmatprep.subr.mxu0 0.0
    %506 = vmatpush1.msra.mxu0 0.0
    %507 = vmatprep.subr.mxu0 0.0
    %508 = vmatpush1.msra.mxu0 0.0
    %509 = vmatprep.subr.mxu0 0.0
    %510 = vmatpush1.msra.mxu0 0.0
    %511 = vmatprep.mubr.f32.mxu0 0.0
    %512 = vmatmul.mubr.f32.gmra.mrb[0].mxu0 %v445
    %v513 = vpop.f32.mrb[0].mxu0
    %v514 = vadd.f32 0.0, %v513
    %v515 = vpop.f32.mrb[0].mxu0
    %516 = vdwg.mxu0
    %v517 = vadd.f32 %v205, %v514
    %v518 = vxor.u32 %v517, 2147483648
    %v519 = vmul.f32 %v518, 1.442695
    %v520 = vpow.pop %v519
    %v521 = vadd.f32 %v520, 1.0
    %v522 = vrcp.pop %v521
    %v523 = vmul.f32 1.0, %v522
    %v524 = vtanh.pop %v517
    %v525 = vmul.f32 %v523, %v435
    %527 = vrot.lane.b32.xlu0 %v524, 32
    %v528 = vpop.permute.xlu0 %527
    %v530 = vmul.f32 %v523, %v528
    %532 = vrot.lane.b32.xlu0 %v530, 32
    %v533 = vpop.permute.xlu0 %532
    %v535 = vadd.f32 %v525, %v533
    %v536 = vtanh.pop %v535
    %538 = vrot.lane.b32.xlu0 %v536, 32
    %v539 = vpop.permute.xlu0 %538
    %v541 = vmul.f32 %v523, %v539
    %543 = vrot.lane.b32.xlu0 %v541, 64
    %v544 = vpop.permute.xlu0 %543
    %v545 = vsel %vm239, %v544, 0
    %547 = vmatprep.subr.mxu0 0.0
    %548 = vmatpush1.msra.mxu0 %v235
    %549 = vmatprep.subr.mxu0 0.0
    %550 = vmatpush1.msra.mxu0 %v236
    %551 = vmatprep.subr.mxu0 0.0
    %552 = vmatpush1.msra.mxu0 %v237
    %553 = vmatprep.subr.mxu0 0.0
    %554 = vmatpush1.msra.mxu0 %v238
    %555 = vmatprep.subr.mxu0 0.0
    %556 = vmatpush1.msra.mxu0 0.0
    %557 = vmatprep.subr.mxu0 0.0
    %558 = vmatpush1.msra.mxu0 0.0
    %559 = vmatprep.subr.mxu0 0.0
    %560 = vmatpush1.msra.mxu0 0.0
    %561 = vmatprep.subr.mxu0 0.0
    %562 = vmatpush1.msra.mxu0 0.0
    %563 = vmatprep.subr.mxu0 0.0
    %564 = vmatpush1.msra.mxu0 0.0
    %565 = vmatprep.subr.mxu0 0.0
    %566 = vmatpush1.msra.mxu0 0.0
    %567 = vmatprep.subr.mxu0 0.0
    %568 = vmatpush1.msra.mxu0 0.0
    %569 = vmatprep.subr.mxu0 0.0
    %570 = vmatpush1.msra.mxu0 0.0
    %571 = vmatprep.subr.mxu0 0.0
    %572 = vmatpush1.msra.mxu0 0.0
    %573 = vmatprep.subr.mxu0 0.0
    %574 = vmatpush1.msra.mxu0 0.0
    %575 = vmatprep.subr.mxu0 0.0
    %576 = vmatpush1.msra.mxu0 0.0
    %577 = vmatprep.subr.mxu0 0.0
    %578 = vmatpush1.msra.mxu0 0.0
    %579 = vmatprep.subr.mxu0 0.0
    %580 = vmatpush1.msra.mxu0 0.0
    %581 = vmatprep.subr.mxu0 0.0
    %582 = vmatpush1.msra.mxu0 0.0
    %583 = vmatprep.subr.mxu0 0.0
    %584 = vmatpush1.msra.mxu0 0.0
    %585 = vmatprep.subr.mxu0 0.0
    %586 = vmatpush1.msra.mxu0 0.0
    %587 = vmatprep.subr.mxu0 0.0
    %588 = vmatpush1.msra.mxu0 0.0
    %589 = vmatprep.subr.mxu0 0.0
    %590 = vmatpush1.msra.mxu0 0.0
    %591 = vmatprep.subr.mxu0 0.0
    %592 = vmatpush1.msra.mxu0 0.0
    %593 = vmatprep.subr.mxu0 0.0
    %594 = vmatpush1.msra.mxu0 0.0
    %595 = vmatprep.subr.mxu0 0.0
    %596 = vmatpush1.msra.mxu0 0.0
    %597 = vmatprep.subr.mxu0 0.0
    %598 = vmatpush1.msra.mxu0 0.0
    %599 = vmatprep.subr.mxu0 0.0
    %600 = vmatpush1.msra.mxu0 0.0
    %601 = vmatprep.subr.mxu0 0.0
    %602 = vmatpush1.msra.mxu0 0.0
    %603 = vmatprep.subr.mxu0 0.0
    %604 = vmatpush1.msra.mxu0 0.0
    %605 = vmatprep.subr.mxu0 0.0
    %606 = vmatpush1.msra.mxu0 0.0
    %607 = vmatprep.subr.mxu0 0.0
    %608 = vmatpush1.msra.mxu0 0.0
    %609 = vmatprep.subr.mxu0 0.0
    %610 = vmatpush1.msra.mxu0 0.0
    %611 = vmatprep.mubr.f32.mxu0 0.0
    %612 = vmatmul.mubr.f32.gmra.mrb[0].mxu0 %v545
    %v613 = vpop.f32.mrb[0].mxu0
    %v614 = vadd.f32 0.0, %v613
    %v615 = vpop.f32.mrb[0].mxu0
    %616 = vdwg.mxu0
    %v617 = vadd.f32 %v210, %v614
    %v618 = vxor.u32 %v617, 2147483648
    %v619 = vmul.f32 %v618, 1.442695
    %v620 = vpow.pop %v619
    %v621 = vadd.f32 %v620, 1.0
    %v622 = vrcp.pop %v621
    %v623 = vmul.f32 1.0, %v622
    %v624 = vtanh.pop %v617
    %v625 = vmul.f32 %v623, %v535
    %627 = vrot.lane.b32.xlu0 %v624, 32
    %v628 = vpop.permute.xlu0 %627
    %v630 = vmul.f32 %v623, %v628
    %632 = vrot.lane.b32.xlu0 %v630, 32
    %v633 = vpop.permute.xlu0 %632
    %v635 = vadd.f32 %v625, %v633
    %v636 = vtanh.pop %v635
    %638 = vrot.lane.b32.xlu0 %v636, 32
    %v639 = vpop.permute.xlu0 %638
    %v641 = vmul.f32 %v623, %v639
    %643 = vrot.lane.b32.xlu0 %v641, 64
    %v644 = vpop.permute.xlu0 %643
    %v645 = vsel %vm239, %v644, 0
    %647 = vmatprep.subr.mxu0 0.0
    %648 = vmatpush1.msra.mxu0 %v235
    %649 = vmatprep.subr.mxu0 0.0
    %650 = vmatpush1.msra.mxu0 %v236
    %651 = vmatprep.subr.mxu0 0.0
    %652 = vmatpush1.msra.mxu0 %v237
    %653 = vmatprep.subr.mxu0 0.0
    %654 = vmatpush1.msra.mxu0 %v238
    %655 = vmatprep.subr.mxu0 0.0
    %656 = vmatpush1.msra.mxu0 0.0
    %657 = vmatprep.subr.mxu0 0.0
    %658 = vmatpush1.msra.mxu0 0.0
    %659 = vmatprep.subr.mxu0 0.0
    %660 = vmatpush1.msra.mxu0 0.0
    %661 = vmatprep.subr.mxu0 0.0
    %662 = vmatpush1.msra.mxu0 0.0
    %663 = vmatprep.subr.mxu0 0.0
    %664 = vmatpush1.msra.mxu0 0.0
    %665 = vmatprep.subr.mxu0 0.0
    %666 = vmatpush1.msra.mxu0 0.0
    %667 = vmatprep.subr.mxu0 0.0
    %668 = vmatpush1.msra.mxu0 0.0
    %669 = vmatprep.subr.mxu0 0.0
    %670 = vmatpush1.msra.mxu0 0.0
    %671 = vmatprep.subr.mxu0 0.0
    %672 = vmatpush1.msra.mxu0 0.0
    %673 = vmatprep.subr.mxu0 0.0
    %674 = vmatpush1.msra.mxu0 0.0
    %675 = vmatprep.subr.mxu0 0.0
    %676 = vmatpush1.msra.mxu0 0.0
    %677 = vmatprep.subr.mxu0 0.0
    %678 = vmatpush1.msra.mxu0 0.0
    %679 = vmatprep.subr.mxu0 0.0
    %680 = vmatpush1.msra.mxu0 0.0
    %681 = vmatprep.subr.mxu0 0.0
    %682 = vmatpush1.msra.mxu0 0.0
    %683 = vmatprep.subr.mxu0 0.0
    %684 = vmatpush1.msra.mxu0 0.0
    %685 = vmatprep.subr.mxu0 0.0
    %686 = vmatpush1.msra.mxu0 0.0
    %687 = vmatprep.subr.mxu0 0.0
    %688 = vmatpush1.msra.mxu0 0.0
    %689 = vmatprep.subr.mxu0 0.0
    %690 = vmatpush1.msra.mxu0 0.0
    %691 = vmatprep.subr.mxu0 0.0
    %692 = vmatpush1.msra.mxu0 0.0
    %693 = vmatprep.subr.mxu0 0.0
    %694 = vmatpush1.msra.mxu0 0.0
    %695 = vmatprep.subr.mxu0 0.0
    %696 = vmatpush1.msra.mxu0 0.0
    %697 = vmatprep.subr.mxu0 0.0
    %698 = vmatpush1.msra.mxu0 0.0
    %699 = vmatprep.subr.mxu0 0.0
    %700 = vmatpush1.msra.mxu0 0.0
    %701 = vmatprep.subr.mxu0 0.0
    %702 = vmatpush1.msra.mxu0 0.0
    %703 = vmatprep.subr.mxu0 0.0
    %704 = vmatpush1.msra.mxu0 0.0
    %705 = vmatprep.subr.mxu0 0.0
    %706 = vmatpush1.msra.mxu0 0.0
    %707 = vmatprep.subr.mxu0 0.0
    %708 = vmatpush1.msra.mxu0 0.0
    %709 = vmatprep.subr.mxu0 0.0
    %710 = vmatpush1.msra.mxu0 0.0
    %711 = vmatprep.mubr.f32.mxu0 0.0
    %712 = vmatmul.mubr.f32.gmra.mrb[0].mxu0 %v645
    %v713 = vpop.f32.mrb[0].mxu0
    %v714 = vadd.f32 0.0, %v713
    %v715 = vpop.f32.mrb[0].mxu0
    %716 = vdwg.mxu0
    %v717 = vadd.f32 %v215, %v714
    %v718 = vxor.u32 %v717, 2147483648
    %v719 = vmul.f32 %v718, 1.442695
    %v720 = vpow.pop %v719
    %v721 = vadd.f32 %v720, 1.0
    %v722 = vrcp.pop %v721
    %v723 = vmul.f32 1.0, %v722
    %v724 = vtanh.pop %v717
    %v725 = vmul.f32 %v723, %v635
    %727 = vrot.lane.b32.xlu0 %v724, 32
    %v728 = vpop.permute.xlu0 %727
    %v730 = vmul.f32 %v723, %v728
    %732 = vrot.lane.b32.xlu0 %v730, 32
    %v733 = vpop.permute.xlu0 %732
    %v735 = vadd.f32 %v725, %v733
    %v736 = vtanh.pop %v735
    %738 = vrot.lane.b32.xlu0 %v736, 32
    %v739 = vpop.permute.xlu0 %738
    %v741 = vmul.f32 %v723, %v739
    %743 = vrot.lane.b32.xlu0 %v741, 64
    %v744 = vpop.permute.xlu0 %743
    %v745 = vsel %vm239, %v744, 0
    %747 = vmatprep.subr.mxu0 0.0
    %748 = vmatpush1.msra.mxu0 %v235
    %749 = vmatprep.subr.mxu0 0.0
    %750 = vmatpush1.msra.mxu0 %v236
    %751 = vmatprep.subr.mxu0 0.0
    %752 = vmatpush1.msra.mxu0 %v237
    %753 = vmatprep.subr.mxu0 0.0
    %754 = vmatpush1.msra.mxu0 %v238
    %755 = vmatprep.subr.mxu0 0.0
    %756 = vmatpush1.msra.mxu0 0.0
    %757 = vmatprep.subr.mxu0 0.0
    %758 = vmatpush1.msra.mxu0 0.0
    %759 = vmatprep.subr.mxu0 0.0
    %760 = vmatpush1.msra.mxu0 0.0
    %761 = vmatprep.subr.mxu0 0.0
    %762 = vmatpush1.msra.mxu0 0.0
    %763 = vmatprep.subr.mxu0 0.0
    %764 = vmatpush1.msra.mxu0 0.0
    %765 = vmatprep.subr.mxu0 0.0
    %766 = vmatpush1.msra.mxu0 0.0
    %767 = vmatprep.subr.mxu0 0.0
    %768 = vmatpush1.msra.mxu0 0.0
    %769 = vmatprep.subr.mxu0 0.0
    %770 = vmatpush1.msra.mxu0 0.0
    %771 = vmatprep.subr.mxu0 0.0
    %772 = vmatpush1.msra.mxu0 0.0
    %773 = vmatprep.subr.mxu0 0.0
    %774 = vmatpush1.msra.mxu0 0.0
    %775 = vmatprep.subr.mxu0 0.0
    %776 = vmatpush1.msra.mxu0 0.0
    %777 = vmatprep.subr.mxu0 0.0
    %778 = vmatpush1.msra.mxu0 0.0
    %779 = vmatprep.subr.mxu0 0.0
    %780 = vmatpush1.msra.mxu0 0.0
    %781 = vmatprep.subr.mxu0 0.0
    %782 = vmatpush1.msra.mxu0 0.0
    %783 = vmatprep.subr.mxu0 0.0
    %784 = vmatpush1.msra.mxu0 0.0
    %785 = vmatprep.subr.mxu0 0.0
    %786 = vmatpush1.msra.mxu0 0.0
    %787 = vmatprep.subr.mxu0 0.0
    %788 = vmatpush1.msra.mxu0 0.0
    %789 = vmatprep.subr.mxu0 0.0
    %790 = vmatpush1.msra.mxu0 0.0
    %791 = vmatprep.subr.mxu0 0.0
    %792 = vmatpush1.msra.mxu0 0.0
    %793 = vmatprep.subr.mxu0 0.0
    %794 = vmatpush1.msra.mxu0 0.0
    %795 = vmatprep.subr.mxu0 0.0
    %796 = vmatpush1.msra.mxu0 0.0
    %797 = vmatprep.subr.mxu0 0.0
    %798 = vmatpush1.msra.mxu0 0.0
    %799 = vmatprep.subr.mxu0 0.0
    %800 = vmatpush1.msra.mxu0 0.0
    %801 = vmatprep.subr.mxu0 0.0
    %802 = vmatpush1.msra.mxu0 0.0
    %803 = vmatprep.subr.mxu0 0.0
    %804 = vmatpush1.msra.mxu0 0.0
    %805 = vmatprep.subr.mxu0 0.0
    %806 = vmatpush1.msra.mxu0 0.0
    %807 = vmatprep.subr.mxu0 0.0
    %808 = vmatpush1.msra.mxu0 0.0
    %809 = vmatprep.subr.mxu0 0.0
    %810 = vmatpush1.msra.mxu0 0.0
    %811 = vmatprep.mubr.f32.mxu0 0.0
    %812 = vmatmul.mubr.f32.gmra.mrb[0].mxu0 %v745
    %v813 = vpop.f32.mrb[0].mxu0
    %v814 = vadd.f32 0.0, %v813
    %v815 = vpop.f32.mrb[0].mxu0
    %816 = vdwg.mxu0
    %v817 = vadd.f32 %v220, %v814
    %v818 = vxor.u32 %v817, 2147483648
    %v819 = vmul.f32 %v818, 1.442695
    %v820 = vpow.pop %v819
    %v821 = vadd.f32 %v820, 1.0
    %v822 = vrcp.pop %v821
    %v823 = vmul.f32 1.0, %v822
    %v824 = vtanh.pop %v817
    %v825 = vmul.f32 %v823, %v735
    %827 = vrot.lane.b32.xlu0 %v824, 32
    %v828 = vpop.permute.xlu0 %827
    %v830 = vmul.f32 %v823, %v828
    %832 = vrot.lane.b32.xlu0 %v830, 32
    %v833 = vpop.permute.xlu0 %832
    %v835 = vadd.f32 %v825, %v833
    %v836 = vtanh.pop %v835
    %838 = vrot.lane.b32.xlu0 %v836, 32
    %v839 = vpop.permute.xlu0 %838
    %v841 = vmul.f32 %v823, %v839
    %843 = vrot.lane.b32.xlu0 %v841, 64
    %v844 = vpop.permute.xlu0 %843
    %v845 = vsel %vm239, %v844, 0
    %847 = vmatprep.subr.mxu0 0.0
    %848 = vmatpush1.msra.mxu0 %v235
    %849 = vmatprep.subr.mxu0 0.0
    %850 = vmatpush1.msra.mxu0 %v236
    %851 = vmatprep.subr.mxu0 0.0
    %852 = vmatpush1.msra.mxu0 %v237
    %853 = vmatprep.subr.mxu0 0.0
    %854 = vmatpush1.msra.mxu0 %v238
    %855 = vmatprep.subr.mxu0 0.0
    %856 = vmatpush1.msra.mxu0 0.0
    %857 = vmatprep.subr.mxu0 0.0
    %858 = vmatpush1.msra.mxu0 0.0
    %859 = vmatprep.subr.mxu0 0.0
    %860 = vmatpush1.msra.mxu0 0.0
    %861 = vmatprep.subr.mxu0 0.0
    %862 = vmatpush1.msra.mxu0 0.0
    %863 = vmatprep.subr.mxu0 0.0
    %864 = vmatpush1.msra.mxu0 0.0
    %865 = vmatprep.subr.mxu0 0.0
    %866 = vmatpush1.msra.mxu0 0.0
    %867 = vmatprep.subr.mxu0 0.0
    %868 = vmatpush1.msra.mxu0 0.0
    %869 = vmatprep.subr.mxu0 0.0
    %870 = vmatpush1.msra.mxu0 0.0
    %871 = vmatprep.subr.mxu0 0.0
    %872 = vmatpush1.msra.mxu0 0.0
    %873 = vmatprep.subr.mxu0 0.0
    %874 = vmatpush1.msra.mxu0 0.0
    %875 = vmatprep.subr.mxu0 0.0
    %876 = vmatpush1.msra.mxu0 0.0
    %877 = vmatprep.subr.mxu0 0.0
    %878 = vmatpush1.msra.mxu0 0.0
    %879 = vmatprep.subr.mxu0 0.0
    %880 = vmatpush1.msra.mxu0 0.0
    %881 = vmatprep.subr.mxu0 0.0
    %882 = vmatpush1.msra.mxu0 0.0
    %883 = vmatprep.subr.mxu0 0.0
    %884 = vmatpush1.msra.mxu0 0.0
    %885 = vmatprep.subr.mxu0 0.0
    %886 = vmatpush1.msra.mxu0 0.0
    %887 = vmatprep.subr.mxu0 0.0
    %888 = vmatpush1.msra.mxu0 0.0
    %889 = vmatprep.subr.mxu0 0.0
    %890 = vmatpush1.msra.mxu0 0.0
    %891 = vmatprep.subr.mxu0 0.0
    %892 = vmatpush1.msra.mxu0 0.0
    %893 = vmatprep.subr.mxu0 0.0
    %894 = vmatpush1.msra.mxu0 0.0
    %895 = vmatprep.subr.mxu0 0.0
    %896 = vmatpush1.msra.mxu0 0.0
    %897 = vmatprep.subr.mxu0 0.0
    %898 = vmatpush1.msra.mxu0 0.0
    %899 = vmatprep.subr.mxu0 0.0
    %900 = vmatpush1.msra.mxu0 0.0
    %901 = vmatprep.subr.mxu0 0.0
    %902 = vmatpush1.msra.mxu0 0.0
    %903 = vmatprep.subr.mxu0 0.0
    %904 = vmatpush1.msra.mxu0 0.0
    %905 = vmatprep.subr.mxu0 0.0
    %906 = vmatpush1.msra.mxu0 0.0
    %907 = vmatprep.subr.mxu0 0.0
    %908 = vmatpush1.msra.mxu0 0.0
    %909 = vmatprep.subr.mxu0 0.0
    %910 = vmatpush1.msra.mxu0 0.0
    %911 = vmatprep.mubr.f32.mxu0 0.0
    %912 = vmatmul.mubr.f32.gmra.mrb[0].mxu0 %v845
    %v913 = vpop.f32.mrb[0].mxu0
    %v914 = vadd.f32 0.0, %v913
    %v915 = vpop.f32.mrb[0].mxu0
    %916 = vdwg.mxu0
    %v917 = vadd.f32 %v225, %v914
    %v918 = vxor.u32 %v917, 2147483648
    %v919 = vmul.f32 %v918, 1.442695
    %v920 = vpow.pop %v919
    %v921 = vadd.f32 %v920, 1.0
    %v922 = vrcp.pop %v921
    %v923 = vmul.f32 1.0, %v922
    %v924 = vtanh.pop %v917
    %v925 = vmul.f32 %v923, %v835
    %927 = vrot.lane.b32.xlu0 %v924, 32
    %v928 = vpop.permute.xlu0 %927
    %v930 = vmul.f32 %v923, %v928
    %932 = vrot.lane.b32.xlu0 %v930, 32
    %v933 = vpop.permute.xlu0 %932
    %v935 = vadd.f32 %v925, %v933
    %v936 = vtanh.pop %v935
    %938 = vrot.lane.b32.xlu0 %v936, 32
    %v939 = vpop.permute.xlu0 %938
    %v941 = vmul.f32 %v923, %v939
    %943 = vrot.lane.b32.xlu0 %v941, 64
    %v944 = vpop.permute.xlu0 %943
    %v945 = vsel %vm239, %v944, 0
    %947 = vmatprep.subr.mxu0 0.0
    %948 = vmatpush1.msra.mxu0 %v235
    %949 = vmatprep.subr.mxu0 0.0
    %950 = vmatpush1.msra.mxu0 %v236
    %951 = vmatprep.subr.mxu0 0.0
    %952 = vmatpush1.msra.mxu0 %v237
    %953 = vmatprep.subr.mxu0 0.0
    %954 = vmatpush1.msra.mxu0 %v238
    %955 = vmatprep.subr.mxu0 0.0
    %956 = vmatpush1.msra.mxu0 0.0
    %957 = vmatprep.subr.mxu0 0.0
    %958 = vmatpush1.msra.mxu0 0.0
    %959 = vmatprep.subr.mxu0 0.0
    %960 = vmatpush1.msra.mxu0 0.0
    %961 = vmatprep.subr.mxu0 0.0
    %962 = vmatpush1.msra.mxu0 0.0
    %963 = vmatprep.subr.mxu0 0.0
    %964 = vmatpush1.msra.mxu0 0.0
    %965 = vmatprep.subr.mxu0 0.0
    %966 = vmatpush1.msra.mxu0 0.0
    %967 = vmatprep.subr.mxu0 0.0
    %968 = vmatpush1.msra.mxu0 0.0
    %969 = vmatprep.subr.mxu0 0.0
    %970 = vmatpush1.msra.mxu0 0.0
    %971 = vmatprep.subr.mxu0 0.0
    %972 = vmatpush1.msra.mxu0 0.0
    %973 = vmatprep.subr.mxu0 0.0
    %974 = vmatpush1.msra.mxu0 0.0
    %975 = vmatprep.subr.mxu0 0.0
    %976 = vmatpush1.msra.mxu0 0.0
    %977 = vmatprep.subr.mxu0 0.0
    %978 = vmatpush1.msra.mxu0 0.0
    %979 = vmatprep.subr.mxu0 0.0
    %980 = vmatpush1.msra.mxu0 0.0
    %981 = vmatprep.subr.mxu0 0.0
    %982 = vmatpush1.msra.mxu0 0.0
    %983 = vmatprep.subr.mxu0 0.0
    %984 = vmatpush1.msra.mxu0 0.0
    %985 = vmatprep.subr.mxu0 0.0
    %986 = vmatpush1.msra.mxu0 0.0
    %987 = vmatprep.subr.mxu0 0.0
    %988 = vmatpush1.msra.mxu0 0.0
    %989 = vmatprep.subr.mxu0 0.0
    %990 = vmatpush1.msra.mxu0 0.0
    %991 = vmatprep.subr.mxu0 0.0
    %992 = vmatpush1.msra.mxu0 0.0
    %993 = vmatprep.subr.mxu0 0.0
    %994 = vmatpush1.msra.mxu0 0.0
    %995 = vmatprep.subr.mxu0 0.0
    %996 = vmatpush1.msra.mxu0 0.0
    %997 = vmatprep.subr.mxu0 0.0
    %998 = vmatpush1.msra.mxu0 0.0
    %999 = vmatprep.subr.mxu0 0.0
    %1000 = vmatpush1.msra.mxu0 0.0
    %1001 = vmatprep.subr.mxu0 0.0
    %1002 = vmatpush1.msra.mxu0 0.0
    %1003 = vmatprep.subr.mxu0 0.0
    %1004 = vmatpush1.msra.mxu0 0.0
    %1005 = vmatprep.subr.mxu0 0.0
    %1006 = vmatpush1.msra.mxu0 0.0
    %1007 = vmatprep.subr.mxu0 0.0
    %1008 = vmatpush1.msra.mxu0 0.0
    %1009 = vmatprep.subr.mxu0 0.0
    %1010 = vmatpush1.msra.mxu0 0.0
    %1011 = vmatprep.mubr.f32.mxu0 0.0
    %1012 = vmatmul.mubr.f32.gmra.mrb[0].mxu0 %v945
    %v1013 = vpop.f32.mrb[0].mxu0
    %v1014 = vadd.f32 0.0, %v1013
    %v1015 = vpop.f32.mrb[0].mxu0
    %1016 = vdwg.mxu0
    %v1017 = vadd.f32 %v230, %v1014
    %v1018 = vxor.u32 %v1017, 2147483648
    %v1019 = vmul.f32 %v1018, 1.442695
    %v1020 = vpow.pop %v1019
    %v1021 = vadd.f32 %v1020, 1.0
    %v1022 = vrcp.pop %v1021
    %v1023 = vmul.f32 1.0, %v1022
    %v1024 = vtanh.pop %v1017
    %v1025 = vmul.f32 %v1023, %v935
    %1027 = vrot.lane.b32.xlu0 %v1024, 32
    %v1028 = vpop.permute.xlu0 %1027
    %v1030 = vmul.f32 %v1023, %v1028
    %1032 = vrot.lane.b32.xlu0 %v1030, 32
    %v1033 = vpop.permute.xlu0 %1032
    %v1035 = vadd.f32 %v1025, %v1033
    %v1036 = vtanh.pop %v1035
    %1038 = vrot.lane.b32.xlu0 %v1036, 32
    %v1039 = vpop.permute.xlu0 %1038
    %v1041 = vmul.f32 %v1023, %v1039
    %1043 = vrot.lane.b32.xlu0 %v1041, 64
    %v1044 = vpop.permute.xlu0 %1043
    %1046 = vst.msk [vmem:[#allocation2] sm:$0xff] %vm239, %v1044
    %1048 = vrot.lane.b32.xlu0 %v1035, 96
    %v1049 = vpop.permute.xlu0 %1048
    %1051 = vst.msk [vmem:[#allocation3] sm:$0xff] %vm239, %v1049
    // Predicated region
    $region46: #{tpu_custom_call.1} parent=1 // pred_check
      %p1052 = pneg %p79
    $region47: #{tpu_custom_call.1} parent=1 // pred_check_branch
      %1054 = sbr.rel (%p1052) target = $region49
    $region48: #{tpu_custom_call.1} parent=1 // pred_region
      %v1055 = vld [vmem:[#allocation11] sm:$0xff]
      %v1056 = vld [vmem:[#allocation11 + $0x8] sm:$0xff]
      %v1057 = vld [vmem:[#allocation11 + $0x10] sm:$0xff]
      %v1058 = vld [vmem:[#allocation11 + $0x18] sm:$0xff]
      %v1059 = vld [vmem:[%s5] sm:$0x1]
      %v1061 = vlaneseq
      %v1062 = vshrl.u32 %v1061, 7
      %v1063 = vsub.s32 0, %v1062
      %v1064 = vrot.slane %v1059, %v1063
      %v1066 = vsel %vm239, %v1044, 0
      %1068 = vmatprep.subr.mxu0 0.0
      %1069 = vmatpush1.msra.mxu0 %v1055
      %1070 = vmatprep.subr.mxu0 0.0
      %1071 = vmatpush1.msra.mxu0 %v1056
      %1072 = vmatprep.subr.mxu0 0.0
      %1073 = vmatpush1.msra.mxu0 %v1057
      %1074 = vmatprep.subr.mxu0 0.0
      %1075 = vmatpush1.msra.mxu0 %v1058
      %1076 = vmatprep.subr.mxu0 0.0
      %1077 = vmatpush1.msra.mxu0 0.0
      %1078 = vmatprep.subr.mxu0 0.0
      %1079 = vmatpush1.msra.mxu0 0.0
      %1080 = vmatprep.subr.mxu0 0.0
      %1081 = vmatpush1.msra.mxu0 0.0
      %1082 = vmatprep.subr.mxu0 0.0
      %1083 = vmatpush1.msra.mxu0 0.0
      %1084 = vmatprep.subr.mxu0 0.0
      %1085 = vmatpush1.msra.mxu0 0.0
      %1086 = vmatprep.subr.mxu0 0.0
      %1087 = vmatpush1.msra.mxu0 0.0
      %1088 = vmatprep.subr.mxu0 0.0
      %1089 = vmatpush1.msra.mxu0 0.0
      %1090 = vmatprep.subr.mxu0 0.0
      %1091 = vmatpush1.msra.mxu0 0.0
      %1092 = vmatprep.subr.mxu0 0.0
      %1093 = vmatpush1.msra.mxu0 0.0
      %1094 = vmatprep.subr.mxu0 0.0
      %1095 = vmatpush1.msra.mxu0 0.0
      %1096 = vmatprep.subr.mxu0 0.0
      %1097 = vmatpush1.msra.mxu0 0.0
      %1098 = vmatprep.subr.mxu0 0.0
      %1099 = vmatpush1.msra.mxu0 0.0
      %1100 = vmatprep.subr.mxu0 0.0
      %1101 = vmatpush1.msra.mxu0 0.0
      %1102 = vmatprep.subr.mxu0 0.0
      %1103 = vmatpush1.msra.mxu0 0.0
      %1104 = vmatprep.subr.mxu0 0.0
      %1105 = vmatpush1.msra.mxu0 0.0
      %1106 = vmatprep.subr.mxu0 0.0
      %1107 = vmatpush1.msra.mxu0 0.0
      %1108 = vmatprep.subr.mxu0 0.0
      %1109 = vmatpush1.msra.mxu0 0.0
      %1110 = vmatprep.subr.mxu0 0.0
      %1111 = vmatpush1.msra.mxu0 0.0
      %1112 = vmatprep.subr.mxu0 0.0
      %1113 = vmatpush1.msra.mxu0 0.0
      %1114 = vmatprep.subr.mxu0 0.0
      %1115 = vmatpush1.msra.mxu0 0.0
      %1116 = vmatprep.subr.mxu0 0.0
      %1117 = vmatpush1.msra.mxu0 0.0
      %1118 = vmatprep.subr.mxu0 0.0
      %1119 = vmatpush1.msra.mxu0 0.0
      %1120 = vmatprep.subr.mxu0 0.0
      %1121 = vmatpush1.msra.mxu0 0.0
      %1122 = vmatprep.subr.mxu0 0.0
      %1123 = vmatpush1.msra.mxu0 0.0
      %1124 = vmatprep.subr.mxu0 0.0
      %1125 = vmatpush1.msra.mxu0 0.0
      %1126 = vmatprep.subr.mxu0 0.0
      %1127 = vmatpush1.msra.mxu0 0.0
      %1128 = vmatprep.subr.mxu0 0.0
      %1129 = vmatpush1.msra.mxu0 0.0
      %1130 = vmatprep.subr.mxu0 0.0
      %1131 = vmatpush1.msra.mxu0 0.0
      %1132 = vmatprep.mubr.f32.mxu0 0.0
      %1133 = vmatmul.mubr.f32.gmra.mrb[0].mxu0 %v1066
      %v1134 = vpop.f32.mrb[0].mxu0
      %v1135 = vadd.f32 %v1064, %v1134
      %v1136 = vpop.f32.mrb[0].mxu0
      %1137 = vdwg.mxu0
      %1138 = vst [vmem:[#allocation13] sm:$0xff] %v1135
    $region49: #{tpu_custom_call.1} parent=1 // pred_fallthru
      _
    // Predicated region
    $region50: #{tpu_custom_call.1} parent=1 // pred_check
      _
    $region51: #{tpu_custom_call.1} parent=1 // pred_check_branch
      %1140 = sbr.rel (0) target = $region53
    $region52: #{tpu_custom_call.1} parent=1 // pred_region
      %s1142 = ssub.s32 128, 128
      %1143 = vsyncadd [#allocation7], %s1142
      %s1145 = sshll.u32 [#allocation13], 4
      %s1146 = int_to_ptr.vmem [resolvable:$true] %s1145
      %1148 = dma.vmem_to_hbm [thread:$0]  %s1146, 128, %s6, [#allocation7]
    $region53: #{tpu_custom_call.1} parent=1 // pred_fallthru
      _
    // Predicated region
    $region54: #{tpu_custom_call.1} parent=1 // pred_check
      _
    $region55: #{tpu_custom_call.1} parent=1 // pred_check_branch
      %1150 = sbr.rel (0) target = $region57
    $region56: #{tpu_custom_call.1} parent=1 // pred_region
      %1151 = dma.done [#allocation7], 128
    $region57: #{tpu_custom_call.1} parent=1 // pred_fallthru
      _
    %1152 = vsyncpa [#allocation6], 1
    %1153 = vsyncpa [#allocation9], 1
    %1154 = vsyncpa [#allocation12], 1
    %1155 = vsyncpa [#allocation7], 1

</llo_original>
